<compile_context>
chip_gen: v7x
topology: tpu7x:2x2x1
jax: 0.10.0
libtpu: 0.0.40
codegen_flags: <defaults>
</compile_context>

<pallas_src>
import functools
from math import sqrt

import jax
import jax.numpy as jnp
from jax import lax
from jax.experimental import pallas as pl
from jax.experimental.pallas import tpu as pltpu


# ----------------------------------------------------------------------------
# In-kernel skew: out[i, j] = rel_full[i, j + (S - 1 - i)]
# (identical to the reference's _skew_matrix pad/flatten/reshape trick)
# ----------------------------------------------------------------------------
def _skew(rel_full, a_ref, b_ref):
    """Barrel shifter: ceil(log2(S)) statically-unrolled, per-row-conditional
    left shifts along the lane axis.  Shifted copies are materialized through
    VMEM scratch refs so only ref-level static slices are required.

    Correctness: the total per-row left shift is (S-1-i) <= S-1 and the kept
    columns j < S always trace back to source columns j + (S-1-i) <= 2S-2 < R,
    so neither the zero fill nor any wrap ever reaches the kept columns.
    """
    S, R = rel_full.shape
    row = lax.broadcasted_iota(jnp.int32, (S, 1), 0)
    shift = (S - 1) - row                       # per-row left-shift amount
    cur = rel_full
    b = 1
    while b < S:
        a_ref[...] = cur
        b_ref[:, :R - b] = a_ref[:, b:]
        b_ref[:, R - b:] = jnp.zeros((S, b), dtype=rel_full.dtype)
        cur = jnp.where((shift & b) != 0, b_ref[...], cur)
        b *= 2
    return cur[:, :S]


# ----------------------------------------------------------------------------
# Pallas kernel: one batch element per grid step, all heads inside.
# ----------------------------------------------------------------------------
def _lrmha_kernel(x_ref, wq_ref, wk_ref, wv_ref, aq_ref, rel_ref, mask_ref,
                  rwo_ref, out_ref,
                  qall_ref, kall_ref, vall_ref, pall_ref, acc_ref,
                  skew_a, skew_b,
                  *, n_heads, key_dim, value_dim):
    f32 = jnp.float32
    x = x_ref[0]                                            # (S, E)

    # Head-fused, lane-dense projections (4 MXU matmuls for ALL heads).
    qall_ref[...] = jnp.dot(x, wq_ref[...], preferred_element_type=f32)  # (S, H*Kd)
    kall_ref[...] = jnp.dot(x, wk_ref[...], preferred_element_type=f32)  # (S, H*Kd)
    vall_ref[...] = jnp.dot(x, wv_ref[...], preferred_element_type=f32)  # (S, H*V)
    pall_ref[...] = jnp.dot(x, aq_ref[...], preferred_element_type=f32)  # (S, H*Kd)

    rel_tab = rel_ref[...]          # (2S, Kd) clamped a_k table (zero-padded row)
    mask = mask_ref[...]            # (S, S) local mask (post-softmax, as reference)
    scale = 1.0 / sqrt(value_dim)

    dn = (((1,), (1,)), ((), ()))   # contract last dims: no explicit transpose

    for h in range(n_heads):
        q = qall_ref[:, h * key_dim:(h + 1) * key_dim]       # (S, Kd)
        k = kall_ref[:, h * key_dim:(h + 1) * key_dim]       # (S, Kd)
        v = vall_ref[:, h * value_dim:(h + 1) * value_dim]   # (S, V)
        p = pall_ref[:, h * key_dim:(h + 1) * key_dim]       # (S, Kd)

        # Content logits and relative-position bias, both on the MXU.
        qk = lax.dot_general(q, k, dn, preferred_element_type=f32)        # (S, S)
        rel_full = lax.dot_general(p, rel_tab, dn, preferred_element_type=f32)  # (S, 2S)
        rel = _skew(rel_full, skew_a, skew_b)                             # (S, S)

        e = (qk + rel) * scale

        # Softmax over keys (f32, matching F.softmax(e, dim=3)).
        e_max = jnp.max(e, axis=-1, keepdims=True)
        pe = jnp.exp(e - e_max)
        inv = pl.reciprocal(jnp.sum(pe, axis=-1, keepdims=True), approx=True)
        alphas = pe * inv * mask                                          # mask AFTER softmax

        acc_ref[:, h * value_dim:(h + 1) * value_dim] = jnp.dot(
            alphas, v, preferred_element_type=f32)                        # (S, V)

    # Head reduction sum_h w_o[h] * qkv_h as one MXU matmul against the
    # kron(w_o, I) matrix, lane-padded to 128 -> single lane-dense store.
    out_ref[0] = jnp.dot(acc_ref[...], rwo_ref[...], preferred_element_type=f32)


# ----------------------------------------------------------------------------
# Host-side (one-time) preprocessing helpers
# ----------------------------------------------------------------------------
def _local_mask(S, lb, lf):
    """Literal JAX transcription of the reference _generate_local_mask."""
    m = jnp.array([0] + [1] * (lb + 1 + lf) + [0] * (S - 1 - lf), dtype=jnp.float32)
    m = jnp.tile(m, S)
    if lb >= S:
        m = jnp.pad(m, (0, lb - S + 1))
        m = m[lb + 1:]
    else:
        right_end = None if abs(S - lb) == 1 else -(S - lb - 1)
        m = m[lb + 1:right_end]
    m = m.reshape(S, -1)
    return m[:S, :S]


# ----------------------------------------------------------------------------
# Wrapper
# ----------------------------------------------------------------------------
def local_relative_mha(x, w_q, w_k, w_v, w_o, a_q, a_k,
                       look_back, look_forward, value_dim):
    B, S, E = x.shape
    H, _, Kd = w_q.shape
    Vd = w_v.shape[-1]
    f32 = jnp.float32

    # Head-fused weight stacks: [:, h*Kd:(h+1)*Kd] == w_q[h], etc.
    wq_s = jnp.transpose(w_q, (1, 0, 2)).reshape(E, H * Kd).astype(f32)
    wk_s = jnp.transpose(w_k, (1, 0, 2)).reshape(E, H * Kd).astype(f32)
    wv_s = jnp.transpose(w_v, (1, 0, 2)).reshape(E, H * Vd).astype(f32)
    aq_s = jnp.transpose(a_q, (1, 0, 2)).reshape(E, H * Kd).astype(f32)

    # Clamped relative-embedding table over offsets -(S-1)..(S-1), zero-padded
    # to an even R = 2S lanes (row R-1 is never selected by the skew).
    pos = jnp.clip(jnp.arange(-S + 1, S), -look_back, look_forward) + look_back
    rel_tab = jnp.pad(a_k[pos].astype(f32), ((0, 1), (0, 0)))     # (2S, Kd)
    R = 2 * S

    # Local mask, invariant across batch/heads.
    mask = _local_mask(S, look_back, look_forward)

    # Head-reduction matrix kron(w_o, I_V), lane-padded to a multiple of 128.
    V_pad = max(128, ((Vd + 127) // 128) * 128)
    rwo = jnp.kron(w_o.astype(f32)[:, None], jnp.eye(Vd, dtype=f32))  # (H*Vd, Vd)
    rwo = jnp.pad(rwo, ((0, 0), (0, V_pad - Vd)))                     # (H*Vd, V_pad)

    kernel = functools.partial(_lrmha_kernel, n_heads=H, key_dim=Kd,
                               value_dim=value_dim)

    out_padded = pl.pallas_call(
        kernel,
        out_shape=jax.ShapeDtypeStruct((B, S, V_pad), f32),
        grid=(B,),
        in_specs=[
            pl.BlockSpec((1, S, E), lambda b: (b, 0, 0)),        # x
            pl.BlockSpec((E, H * Kd), lambda b: (0, 0)),         # w_q stack
            pl.BlockSpec((E, H * Kd), lambda b: (0, 0)),         # w_k stack
            pl.BlockSpec((E, H * Vd), lambda b: (0, 0)),         # w_v stack
            pl.BlockSpec((E, H * Kd), lambda b: (0, 0)),         # a_q stack
            pl.BlockSpec((R, Kd), lambda b: (0, 0)),             # relative table
            pl.BlockSpec((S, S), lambda b: (0, 0)),              # local mask
            pl.BlockSpec((H * Vd, V_pad), lambda b: (0, 0)),     # head-reduce matrix
        ],
        out_specs=pl.BlockSpec((1, S, V_pad), lambda b: (b, 0, 0)),
        scratch_shapes=[
            pltpu.VMEM((S, H * Kd), f32),    # fused Q
            pltpu.VMEM((S, H * Kd), f32),    # fused K
            pltpu.VMEM((S, H * Vd), f32),    # fused V
            pltpu.VMEM((S, H * Kd), f32),    # fused positional Q
            pltpu.VMEM((S, H * Vd), f32),    # per-head attention outputs
            pltpu.VMEM((S, R), f32),         # skew scratch A
            pltpu.VMEM((S, R), f32),         # skew scratch B
        ],
        compiler_params=pltpu.CompilerParams(
            dimension_semantics=("parallel",)),
    )(x.astype(f32), wq_s, wk_s, wv_s, aq_s, rel_tab, mask, rwo)

    return out_padded[..., :Vd]


# ----------------------------------------------------------------------------
# Pure-JAX reference mirroring the PyTorch code (skew + mask built literally)
# ----------------------------------------------------------------------------
def reference(x, w_q, w_k, w_v, w_o, a_q, a_k, lb, lf, value_dim):
    B, S, _ = x.shape
    queries = jnp.einsum('bse,heq->bhsq', x, w_q)
    keys = jnp.einsum('bse,hek->bhsk', x, w_k)
    values = jnp.einsum('bse,hev->bhsv', x, w_v)
    q_k = jnp.einsum('bhiq,bhjq->bhij', queries, keys)
    pos_q = jnp.einsum('bse,heq->bhsq', x, a_q)
    pos_vec = jnp.clip(jnp.arange(-S + 1, S), -lb, lf) + lb
    rel_emb = a_k[pos_vec]                                   # (2S-1, Kd)
    q_rel = jnp.einsum('bhiq,rq->bhir', pos_q, rel_emb)      # (B,H,S,2S-1)
    # _skew_matrix
    H = q_rel.shape[1]
    m = jnp.pad(q_rel, ((0, 0), (0, 0), (0, 0), (0, 1)))
    m = m.reshape(B, H, -1)
    m = jnp.pad(m, ((0, 0), (0, 0), (0, S - 1)))
    m = m.reshape(B, H, S + 1, 2 * S - 1)
    q_rel = m[:, :, :S, (2 * S - 1) - S:]
    e = (q_k + q_rel) / sqrt(value_dim)
    alphas = jax.nn.softmax(e, axis=3)
    mask = _local_mask(S, lb, lf)
    alphas = alphas * mask[None, None]
    qkv = jnp.einsum('bhij,bhjv->bhiv', alphas, values)
    return jnp.einsum('bhsv,h->bsv', qkv, w_o)


# ----------------------------------------------------------------------------
# Main
# ----------------------------------------------------------------------------
if __name__ == "__main__":
    # Small shapes consistent with the module's forward.
    B, S = 2, 8
    embed_dim, key_dim, value_dim = 32, 16, 16
    n_heads, look_back, look_forward = 4, 4, 0

    key = jax.random.PRNGKey(0)
    kx, kq, kk, kv, kaq, kak = jax.random.split(key, 6)

    # Deterministic synthetic parameters (kaiming-uniform-like bounds, w_o=1).
    def uinit(k, shape, fan_in):
        bound = 1.0 / sqrt(fan_in)
        return jax.random.uniform(k, shape, jnp.float32, -bound, bound)

    w_q = uinit(kq, (n_heads, embed_dim, key_dim), embed_dim * key_dim)
    w_k = uinit(kk, (n_heads, embed_dim, key_dim), embed_dim * key_dim)
    w_v = uinit(kv, (n_heads, embed_dim, value_dim), embed_dim * value_dim)
    a_q = uinit(kaq, (n_heads, embed_dim, key_dim), embed_dim * key_dim)
    a_k = uinit(kak, (look_back + 1 + look_forward, key_dim), key_dim)
    w_o = jnp.ones((n_heads,), jnp.float32)

    x = jax.random.normal(kx, (B, S, embed_dim), jnp.float32)

    out = local_relative_mha(x, w_q, w_k, w_v, w_o, a_q, a_k,
                             look_back, look_forward, value_dim)
    out = jax.block_until_ready(out)

    ref = reference(x, w_q, w_k, w_v, w_o, a_q, a_k,
                    look_back, look_forward, value_dim)

    assert out.shape == (B, S, value_dim)
    assert jnp.allclose(out, ref, rtol=2e-3, atol=2e-3), (
        f"max abs err {jnp.max(jnp.abs(out - ref))}")

    print("KERNEL_OK")
</pallas_src>

<mosaic_0001>
module attributes {stable_mosaic.version = 11 : i64} {
  func.func @_lrmha_kernel(%arg0: i32, %arg1: memref<1x8x32xf32, #tpu.memory_space<vmem>>, %arg2: memref<32x64xf32, #tpu.memory_space<vmem>>, %arg3: memref<32x64xf32, #tpu.memory_space<vmem>>, %arg4: memref<32x64xf32, #tpu.memory_space<vmem>>, %arg5: memref<32x64xf32, #tpu.memory_space<vmem>>, %arg6: memref<16x16xf32, #tpu.memory_space<vmem>>, %arg7: memref<8x8xf32, #tpu.memory_space<vmem>>, %arg8: memref<64x128xf32, #tpu.memory_space<vmem>>, %arg9: memref<1x8x128xf32, #tpu.memory_space<vmem>>, %arg10: memref<8x64xf32, #tpu.memory_space<vmem>>, %arg11: memref<8x64xf32, #tpu.memory_space<vmem>>, %arg12: memref<8x64xf32, #tpu.memory_space<vmem>>, %arg13: memref<8x64xf32, #tpu.memory_space<vmem>>, %arg14: memref<8x64xf32, #tpu.memory_space<vmem>>, %arg15: memref<8x16xf32, #tpu.memory_space<vmem>>, %arg16: memref<8x16xf32, #tpu.memory_space<vmem>>) attributes {dimension_semantics = [#tpu.dimension_semantics<parallel>], iteration_bounds = array<i64: 2>, scalar_prefetch = 0 : i64, scratch_operands = 7 : i64, tpu.core_type = #tpu.core_type<tc>, window_params = [{transform_indices = @transform_0, window_bounds = array<i64: 1, 8, 32>}, {pipeline_mode = #tpu.pipeline_mode<synchronous>, transform_indices = @transform_1, window_bounds = array<i64: 32, 64>}, {pipeline_mode = #tpu.pipeline_mode<synchronous>, transform_indices = @transform_2, window_bounds = array<i64: 32, 64>}, {pipeline_mode = #tpu.pipeline_mode<synchronous>, transform_indices = @transform_3, window_bounds = array<i64: 32, 64>}, {pipeline_mode = #tpu.pipeline_mode<synchronous>, transform_indices = @transform_4, window_bounds = array<i64: 32, 64>}, {pipeline_mode = #tpu.pipeline_mode<synchronous>, transform_indices = @transform_5, window_bounds = array<i64: 16, 16>}, {pipeline_mode = #tpu.pipeline_mode<synchronous>, transform_indices = @transform_6, window_bounds = array<i64: 8, 8>}, {pipeline_mode = #tpu.pipeline_mode<synchronous>, transform_indices = @transform_7, window_bounds = array<i64: 64, 128>}, {transform_indices = @transform_8, window_bounds = array<i64: 1, 8, 128>}]} {
    %c0 = arith.constant 0 : index
    %c0_0 = arith.constant 0 : index
    %c0_1 = arith.constant 0 : index
    %0 = vector.load %arg1[%c0, %c0_0, %c0_1] : memref<1x8x32xf32, #tpu.memory_space<vmem>>, vector<1x8x32xf32>
    %1 = vector.shape_cast %0 : vector<1x8x32xf32> to vector<8x32xf32>
    %c0_2 = arith.constant 0 : index
    %c0_3 = arith.constant 0 : index
    %2 = vector.load %arg2[%c0_2, %c0_3] : memref<32x64xf32, #tpu.memory_space<vmem>>, vector<32x64xf32>
    %cst = arith.constant dense<0.000000e+00> : vector<8x64xf32>
    %3 = tpu.matmul %1, %2, %cst {dimension_numbers = #tpu.dot_dimension_numbers<[1], [0], [0], [1], [0, 0, 1, 1], [], []>} : vector<8x32xf32>, vector<32x64xf32>, vector<8x64xf32> -> vector<8x64xf32>
    %c0_4 = arith.constant 0 : index
    %c0_5 = arith.constant 0 : index
    %4 = vector.load %arg10[%c0_4, %c0_5] : memref<8x64xf32, #tpu.memory_space<vmem>>, vector<8x64xf32>
    tpu.vector_store %arg10[%c0_4, %c0_5], %3 {strides = array<i32>} : memref<8x64xf32, #tpu.memory_space<vmem>>, vector<8x64xf32>,
    %c0_6 = arith.constant 0 : index
    %c0_7 = arith.constant 0 : index
    %5 = vector.load %arg3[%c0_6, %c0_7] : memref<32x64xf32, #tpu.memory_space<vmem>>, vector<32x64xf32>
    %cst_8 = arith.constant dense<0.000000e+00> : vector<8x64xf32>
    %6 = tpu.matmul %1, %5, %cst_8 {dimension_numbers = #tpu.dot_dimension_numbers<[1], [0], [0], [1], [0, 0, 1, 1], [], []>} : vector<8x32xf32>, vector<32x64xf32>, vector<8x64xf32> -> vector<8x64xf32>
    %c0_9 = arith.constant 0 : index
    %c0_10 = arith.constant 0 : index
    %7 = vector.load %arg11[%c0_9, %c0_10] : memref<8x64xf32, #tpu.memory_space<vmem>>, vector<8x64xf32>
    tpu.vector_store %arg11[%c0_9, %c0_10], %6 {strides = array<i32>} : memref<8x64xf32, #tpu.memory_space<vmem>>, vector<8x64xf32>,
    %c0_11 = arith.constant 0 : index
    %c0_12 = arith.constant 0 : index
    %8 = vector.load %arg4[%c0_11, %c0_12] : memref<32x64xf32, #tpu.memory_space<vmem>>, vector<32x64xf32>
    %cst_13 = arith.constant dense<0.000000e+00> : vector<8x64xf32>
    %9 = tpu.matmul %1, %8, %cst_13 {dimension_numbers = #tpu.dot_dimension_numbers<[1], [0], [0], [1], [0, 0, 1, 1], [], []>} : vector<8x32xf32>, vector<32x64xf32>, vector<8x64xf32> -> vector<8x64xf32>
    %c0_14 = arith.constant 0 : index
    %c0_15 = arith.constant 0 : index
    %10 = vector.load %arg12[%c0_14, %c0_15] : memref<8x64xf32, #tpu.memory_space<vmem>>, vector<8x64xf32>
    tpu.vector_store %arg12[%c0_14, %c0_15], %9 {strides = array<i32>} : memref<8x64xf32, #tpu.memory_space<vmem>>, vector<8x64xf32>,
    %c0_16 = arith.constant 0 : index
    %c0_17 = arith.constant 0 : index
    %11 = vector.load %arg5[%c0_16, %c0_17] : memref<32x64xf32, #tpu.memory_space<vmem>>, vector<32x64xf32>
    %cst_18 = arith.constant dense<0.000000e+00> : vector<8x64xf32>
    %12 = tpu.matmul %1, %11, %cst_18 {dimension_numbers = #tpu.dot_dimension_numbers<[1], [0], [0], [1], [0, 0, 1, 1], [], []>} : vector<8x32xf32>, vector<32x64xf32>, vector<8x64xf32> -> vector<8x64xf32>
    %c0_19 = arith.constant 0 : index
    %c0_20 = arith.constant 0 : index
    %13 = vector.load %arg13[%c0_19, %c0_20] : memref<8x64xf32, #tpu.memory_space<vmem>>, vector<8x64xf32>
    tpu.vector_store %arg13[%c0_19, %c0_20], %12 {strides = array<i32>} : memref<8x64xf32, #tpu.memory_space<vmem>>, vector<8x64xf32>,
    %c0_21 = arith.constant 0 : index
    %c0_22 = arith.constant 0 : index
    %14 = vector.load %arg6[%c0_21, %c0_22] : memref<16x16xf32, #tpu.memory_space<vmem>>, vector<16x16xf32>
    %c0_23 = arith.constant 0 : index
    %c0_24 = arith.constant 0 : index
    %15 = vector.load %arg7[%c0_23, %c0_24] : memref<8x8xf32, #tpu.memory_space<vmem>>, vector<8x8xf32>
    %c0_25 = arith.constant 0 : index
    %c0_26 = arith.constant 0 : index
    %16 = vector.load %arg10[%c0_25, %c0_26] : memref<8x64xf32, #tpu.memory_space<vmem>>, vector<8x16xf32>
    %c0_27 = arith.constant 0 : index
    %c0_28 = arith.constant 0 : index
    %17 = vector.load %arg11[%c0_27, %c0_28] : memref<8x64xf32, #tpu.memory_space<vmem>>, vector<8x16xf32>
    %c0_29 = arith.constant 0 : index
    %c0_30 = arith.constant 0 : index
    %18 = vector.load %arg12[%c0_29, %c0_30] : memref<8x64xf32, #tpu.memory_space<vmem>>, vector<8x16xf32>
    %c0_31 = arith.constant 0 : index
    %c0_32 = arith.constant 0 : index
    %19 = vector.load %arg13[%c0_31, %c0_32] : memref<8x64xf32, #tpu.memory_space<vmem>>, vector<8x16xf32>
    %cst_33 = arith.constant dense<0.000000e+00> : vector<8x8xf32>
    %20 = tpu.matmul %16, %17, %cst_33 {dimension_numbers = #tpu.dot_dimension_numbers<[1], [1], [0], [0], [0, 0, 1, 0], [], []>} : vector<8x16xf32>, vector<8x16xf32>, vector<8x8xf32> -> vector<8x8xf32>
    %cst_34 = arith.constant dense<0.000000e+00> : vector<8x16xf32>
    %21 = tpu.matmul %19, %14, %cst_34 {dimension_numbers = #tpu.dot_dimension_numbers<[1], [1], [0], [0], [0, 0, 1, 0], [], []>} : vector<8x16xf32>, vector<16x16xf32>, vector<8x16xf32> -> vector<8x16xf32>
    %22 = tpu.iota {dimensions = array<i32: 0>} : vector<8x1xi32>
    %c7_i32 = arith.constant 7 : i32
    %23 = vector.broadcast %c7_i32 : i32 to vector<8x1xi32>
    %24 = arith.subi %23, %22 : vector<8x1xi32>
    %c0_35 = arith.constant 0 : index
    %c0_36 = arith.constant 0 : index
    %25 = vector.load %arg15[%c0_35, %c0_36] : memref<8x16xf32, #tpu.memory_space<vmem>>, vector<8x16xf32>
    tpu.vector_store %arg15[%c0_35, %c0_36], %21 {strides = array<i32>} : memref<8x16xf32, #tpu.memory_space<vmem>>, vector<8x16xf32>,
    %c0_37 = arith.constant 0 : index
    %c1 = arith.constant 1 : index
    %26 = vector.load %arg15[%c0_37, %c1] : memref<8x16xf32, #tpu.memory_space<vmem>>, vector<8x15xf32>
    %c0_38 = arith.constant 0 : index
    %c0_39 = arith.constant 0 : index
    %27 = vector.load %arg16[%c0_38, %c0_39] : memref<8x16xf32, #tpu.memory_space<vmem>>, vector<8x15xf32>
    tpu.vector_store %arg16[%c0_38, %c0_39], %26 {strides = array<i32>} : memref<8x16xf32, #tpu.memory_space<vmem>>, vector<8x15xf32>,
    %cst_40 = arith.constant 0.000000e+00 : f32
    %28 = vector.broadcast %cst_40 : f32 to vector<8x1xf32>
    %c0_41 = arith.constant 0 : index
    %c15 = arith.constant 15 : index
    %29 = vector.load %arg16[%c0_41, %c15] : memref<8x16xf32, #tpu.memory_space<vmem>>, vector<8x1xf32>
    tpu.vector_store %arg16[%c0_41, %c15], %28 {strides = array<i32>} : memref<8x16xf32, #tpu.memory_space<vmem>>, vector<8x1xf32>,
    %c1_i32 = arith.constant 1 : i32
    %30 = vector.broadcast %c1_i32 : i32 to vector<8x1xi32>
    %31 = arith.andi %24, %30 : vector<8x1xi32>
    %c0_i32 = arith.constant 0 : i32
    %32 = vector.broadcast %c0_i32 : i32 to vector<8x1xi32>
    %33 = arith.cmpi ne, %31, %32 : vector<8x1xi32>
    %c0_42 = arith.constant 0 : index
    %c0_43 = arith.constant 0 : index
    %34 = vector.load %arg16[%c0_42, %c0_43] : memref<8x16xf32, #tpu.memory_space<vmem>>, vector<8x16xf32>
    %35 = vector.shape_cast %33 : vector<8x1xi1> to vector<8x1xi1>
    %36 = vector.broadcast %35 : vector<8x1xi1> to vector<8x16xi1>
    %37 = arith.select %36, %34, %21 : vector<8x16xi1>, vector<8x16xf32>
    %c0_44 = arith.constant 0 : index
    %c0_45 = arith.constant 0 : index
    %38 = vector.load %arg15[%c0_44, %c0_45] : memref<8x16xf32, #tpu.memory_space<vmem>>, vector<8x16xf32>
    tpu.vector_store %arg15[%c0_44, %c0_45], %37 {strides = array<i32>} : memref<8x16xf32, #tpu.memory_space<vmem>>, vector<8x16xf32>,
    %c0_46 = arith.constant 0 : index
    %c2 = arith.constant 2 : index
    %39 = vector.load %arg15[%c0_46, %c2] : memref<8x16xf32, #tpu.memory_space<vmem>>, vector<8x14xf32>
    %c0_47 = arith.constant 0 : index
    %c0_48 = arith.constant 0 : index
    %40 = vector.load %arg16[%c0_47, %c0_48] : memref<8x16xf32, #tpu.memory_space<vmem>>, vector<8x14xf32>
    tpu.vector_store %arg16[%c0_47, %c0_48], %39 {strides = array<i32>} : memref<8x16xf32, #tpu.memory_space<vmem>>, vector<8x14xf32>,
    %cst_49 = arith.constant 0.000000e+00 : f32
    %41 = vector.broadcast %cst_49 : f32 to vector<8x2xf32>
    %c0_50 = arith.constant 0 : index
    %c14 = arith.constant 14 : index
    %42 = vector.load %arg16[%c0_50, %c14] : memref<8x16xf32, #tpu.memory_space<vmem>>, vector<8x2xf32>
    tpu.vector_store %arg16[%c0_50, %c14], %41 {strides = array<i32>} : memref<8x16xf32, #tpu.memory_space<vmem>>, vector<8x2xf32>,
    %c2_i32 = arith.constant 2 : i32
    %43 = vector.broadcast %c2_i32 : i32 to vector<8x1xi32>
    %44 = arith.andi %24, %43 : vector<8x1xi32>
    %c0_i32_51 = arith.constant 0 : i32
    %45 = vector.broadcast %c0_i32_51 : i32 to vector<8x1xi32>
    %46 = arith.cmpi ne, %44, %45 : vector<8x1xi32>
    %c0_52 = arith.constant 0 : index
    %c0_53 = arith.constant 0 : index
    %47 = vector.load %arg16[%c0_52, %c0_53] : memref<8x16xf32, #tpu.memory_space<vmem>>, vector<8x16xf32>
    %48 = vector.shape_cast %46 : vector<8x1xi1> to vector<8x1xi1>
    %49 = vector.broadcast %48 : vector<8x1xi1> to vector<8x16xi1>
    %50 = arith.select %49, %47, %37 : vector<8x16xi1>, vector<8x16xf32>
    %c0_54 = arith.constant 0 : index
    %c0_55 = arith.constant 0 : index
    %51 = vector.load %arg15[%c0_54, %c0_55] : memref<8x16xf32, #tpu.memory_space<vmem>>, vector<8x16xf32>
    tpu.vector_store %arg15[%c0_54, %c0_55], %50 {strides = array<i32>} : memref<8x16xf32, #tpu.memory_space<vmem>>, vector<8x16xf32>,
    %c0_56 = arith.constant 0 : index
    %c4 = arith.constant 4 : index
    %52 = vector.load %arg15[%c0_56, %c4] : memref<8x16xf32, #tpu.memory_space<vmem>>, vector<8x12xf32>
    %c0_57 = arith.constant 0 : index
    %c0_58 = arith.constant 0 : index
    %53 = vector.load %arg16[%c0_57, %c0_58] : memref<8x16xf32, #tpu.memory_space<vmem>>, vector<8x12xf32>
    tpu.vector_store %arg16[%c0_57, %c0_58], %52 {strides = array<i32>} : memref<8x16xf32, #tpu.memory_space<vmem>>, vector<8x12xf32>,
    %cst_59 = arith.constant 0.000000e+00 : f32
    %54 = vector.broadcast %cst_59 : f32 to vector<8x4xf32>
    %c0_60 = arith.constant 0 : index
    %c12 = arith.constant 12 : index
    %55 = vector.load %arg16[%c0_60, %c12] : memref<8x16xf32, #tpu.memory_space<vmem>>, vector<8x4xf32>
    tpu.vector_store %arg16[%c0_60, %c12], %54 {strides = array<i32>} : memref<8x16xf32, #tpu.memory_space<vmem>>, vector<8x4xf32>,
    %c4_i32 = arith.constant 4 : i32
    %56 = vector.broadcast %c4_i32 : i32 to vector<8x1xi32>
    %57 = arith.andi %24, %56 : vector<8x1xi32>
    %c0_i32_61 = arith.constant 0 : i32
    %58 = vector.broadcast %c0_i32_61 : i32 to vector<8x1xi32>
    %59 = arith.cmpi ne, %57, %58 : vector<8x1xi32>
    %c0_62 = arith.constant 0 : index
    %c0_63 = arith.constant 0 : index
    %60 = vector.load %arg16[%c0_62, %c0_63] : memref<8x16xf32, #tpu.memory_space<vmem>>, vector<8x16xf32>
    %61 = vector.shape_cast %59 : vector<8x1xi1> to vector<8x1xi1>
    %62 = vector.broadcast %61 : vector<8x1xi1> to vector<8x16xi1>
    %63 = arith.select %62, %60, %50 : vector<8x16xi1>, vector<8x16xf32>
    %64 = vector.extract_strided_slice %63 {offsets = [0, 0], sizes = [8, 8], strides = [1, 1]} : vector<8x16xf32> to vector<8x8xf32>
    %65 = arith.addf %20, %64 : vector<8x8xf32>
    %cst_64 = arith.constant 2.500000e-01 : f32
    %66 = vector.broadcast %cst_64 : f32 to vector<8x8xf32>
    %67 = arith.mulf %65, %66 : vector<8x8xf32>
    %cst_65 = arith.constant dense<0xFF800000> : vector<8xf32>
    %68 = vector.multi_reduction <maximumf>, %67, %cst_65 [1] : vector<8x8xf32> to vector<8xf32>
    %69 = vector.shape_cast %68 : vector<8xf32> to vector<8x1xf32>
    %70 = vector.broadcast %69 : vector<8x1xf32> to vector<8x8xf32>
    %71 = arith.subf %67, %70 : vector<8x8xf32>
    %72 = math.exp %71 : vector<8x8xf32>
    %cst_66 = arith.constant dense<0.000000e+00> : vector<8xf32>
    %73 = vector.multi_reduction <add>, %72, %cst_66 [1] : vector<8x8xf32> to vector<8xf32>
    %74 = vector.shape_cast %73 : vector<8xf32> to vector<8x1xf32>
    %75 = tpu.reciprocal %74 {approx = true} : vector<8x1xf32> -> vector<8x1xf32>
    %76 = vector.broadcast %75 : vector<8x1xf32> to vector<8x8xf32>
    %77 = arith.mulf %72, %76 : vector<8x8xf32>
    %78 = arith.mulf %77, %15 : vector<8x8xf32>
    %cst_67 = arith.constant dense<0.000000e+00> : vector<8x16xf32>
    %79 = tpu.matmul %78, %18, %cst_67 {dimension_numbers = #tpu.dot_dimension_numbers<[1], [0], [0], [1], [0, 0, 1, 1], [], []>} : vector<8x8xf32>, vector<8x16xf32>, vector<8x16xf32> -> vector<8x16xf32>
    %c0_68 = arith.constant 0 : index
    %c0_69 = arith.constant 0 : index
    %80 = vector.load %arg14[%c0_68, %c0_69] : memref<8x64xf32, #tpu.memory_space<vmem>>, vector<8x16xf32>
    tpu.vector_store %arg14[%c0_68, %c0_69], %79 {strides = array<i32>} : memref<8x64xf32, #tpu.memory_space<vmem>>, vector<8x16xf32>,
    %c0_70 = arith.constant 0 : index
    %c16 = arith.constant 16 : index
    %81 = vector.load %arg10[%c0_70, %c16] : memref<8x64xf32, #tpu.memory_space<vmem>>, vector<8x16xf32>
    %c0_71 = arith.constant 0 : index
    %c16_72 = arith.constant 16 : index
    %82 = vector.load %arg11[%c0_71, %c16_72] : memref<8x64xf32, #tpu.memory_space<vmem>>, vector<8x16xf32>
    %c0_73 = arith.constant 0 : index
    %c16_74 = arith.constant 16 : index
    %83 = vector.load %arg12[%c0_73, %c16_74] : memref<8x64xf32, #tpu.memory_space<vmem>>, vector<8x16xf32>
    %c0_75 = arith.constant 0 : index
    %c16_76 = arith.constant 16 : index
    %84 = vector.load %arg13[%c0_75, %c16_76] : memref<8x64xf32, #tpu.memory_space<vmem>>, vector<8x16xf32>
    %cst_77 = arith.constant dense<0.000000e+00> : vector<8x8xf32>
    %85 = tpu.matmul %81, %82, %cst_77 {dimension_numbers = #tpu.dot_dimension_numbers<[1], [1], [0], [0], [0, 0, 1, 0], [], []>} : vector<8x16xf32>, vector<8x16xf32>, vector<8x8xf32> -> vector<8x8xf32>
    %cst_78 = arith.constant dense<0.000000e+00> : vector<8x16xf32>
    %86 = tpu.matmul %84, %14, %cst_78 {dimension_numbers = #tpu.dot_dimension_numbers<[1], [1], [0], [0], [0, 0, 1, 0], [], []>} : vector<8x16xf32>, vector<16x16xf32>, vector<8x16xf32> -> vector<8x16xf32>
    %87 = tpu.iota {dimensions = array<i32: 0>} : vector<8x1xi32>
    %c7_i32_79 = arith.constant 7 : i32
    %88 = vector.broadcast %c7_i32_79 : i32 to vector<8x1xi32>
    %89 = arith.subi %88, %87 : vector<8x1xi32>
    %c0_80 = arith.constant 0 : index
    %c0_81 = arith.constant 0 : index
    %90 = vector.load %arg15[%c0_80, %c0_81] : memref<8x16xf32, #tpu.memory_space<vmem>>, vector<8x16xf32>
    tpu.vector_store %arg15[%c0_80, %c0_81], %86 {strides = array<i32>} : memref<8x16xf32, #tpu.memory_space<vmem>>, vector<8x16xf32>,
    %c0_82 = arith.constant 0 : index
    %c1_83 = arith.constant 1 : index
    %91 = vector.load %arg15[%c0_82, %c1_83] : memref<8x16xf32, #tpu.memory_space<vmem>>, vector<8x15xf32>
    %c0_84 = arith.constant 0 : index
    %c0_85 = arith.constant 0 : index
    %92 = vector.load %arg16[%c0_84, %c0_85] : memref<8x16xf32, #tpu.memory_space<vmem>>, vector<8x15xf32>
    tpu.vector_store %arg16[%c0_84, %c0_85], %91 {strides = array<i32>} : memref<8x16xf32, #tpu.memory_space<vmem>>, vector<8x15xf32>,
    %cst_86 = arith.constant 0.000000e+00 : f32
    %93 = vector.broadcast %cst_86 : f32 to vector<8x1xf32>
    %c0_87 = arith.constant 0 : index
    %c15_88 = arith.constant 15 : index
    %94 = vector.load %arg16[%c0_87, %c15_88] : memref<8x16xf32, #tpu.memory_space<vmem>>, vector<8x1xf32>
    tpu.vector_store %arg16[%c0_87, %c15_88], %93 {strides = array<i32>} : memref<8x16xf32, #tpu.memory_space<vmem>>, vector<8x1xf32>,
    %c1_i32_89 = arith.constant 1 : i32
    %95 = vector.broadcast %c1_i32_89 : i32 to vector<8x1xi32>
    %96 = arith.andi %89, %95 : vector<8x1xi32>
    %c0_i32_90 = arith.constant 0 : i32
    %97 = vector.broadcast %c0_i32_90 : i32 to vector<8x1xi32>
    %98 = arith.cmpi ne, %96, %97 : vector<8x1xi32>
    %c0_91 = arith.constant 0 : index
    %c0_92 = arith.constant 0 : index
    %99 = vector.load %arg16[%c0_91, %c0_92] : memref<8x16xf32, #tpu.memory_space<vmem>>, vector<8x16xf32>
    %100 = vector.shape_cast %98 : vector<8x1xi1> to vector<8x1xi1>
    %101 = vector.broadcast %100 : vector<8x1xi1> to vector<8x16xi1>
    %102 = arith.select %101, %99, %86 : vector<8x16xi1>, vector<8x16xf32>
    %c0_93 = arith.constant 0 : index
    %c0_94 = arith.constant 0 : index
    %103 = vector.load %arg15[%c0_93, %c0_94] : memref<8x16xf32, #tpu.memory_space<vmem>>, vector<8x16xf32>
    tpu.vector_store %arg15[%c0_93, %c0_94], %102 {strides = array<i32>} : memref<8x16xf32, #tpu.memory_space<vmem>>, vector<8x16xf32>,
    %c0_95 = arith.constant 0 : index
    %c2_96 = arith.constant 2 : index
    %104 = vector.load %arg15[%c0_95, %c2_96] : memref<8x16xf32, #tpu.memory_space<vmem>>, vector<8x14xf32>
    %c0_97 = arith.constant 0 : index
    %c0_98 = arith.constant 0 : index
    %105 = vector.load %arg16[%c0_97, %c0_98] : memref<8x16xf32, #tpu.memory_space<vmem>>, vector<8x14xf32>
    tpu.vector_store %arg16[%c0_97, %c0_98], %104 {strides = array<i32>} : memref<8x16xf32, #tpu.memory_space<vmem>>, vector<8x14xf32>,
    %cst_99 = arith.constant 0.000000e+00 : f32
    %106 = vector.broadcast %cst_99 : f32 to vector<8x2xf32>
    %c0_100 = arith.constant 0 : index
    %c14_101 = arith.constant 14 : index
    %107 = vector.load %arg16[%c0_100, %c14_101] : memref<8x16xf32, #tpu.memory_space<vmem>>, vector<8x2xf32>
    tpu.vector_store %arg16[%c0_100, %c14_101], %106 {strides = array<i32>} : memref<8x16xf32, #tpu.memory_space<vmem>>, vector<8x2xf32>,
    %c2_i32_102 = arith.constant 2 : i32
    %108 = vector.broadcast %c2_i32_102 : i32 to vector<8x1xi32>
    %109 = arith.andi %89, %108 : vector<8x1xi32>
    %c0_i32_103 = arith.constant 0 : i32
    %110 = vector.broadcast %c0_i32_103 : i32 to vector<8x1xi32>
    %111 = arith.cmpi ne, %109, %110 : vector<8x1xi32>
    %c0_104 = arith.constant 0 : index
    %c0_105 = arith.constant 0 : index
    %112 = vector.load %arg16[%c0_104, %c0_105] : memref<8x16xf32, #tpu.memory_space<vmem>>, vector<8x16xf32>
    %113 = vector.shape_cast %111 : vector<8x1xi1> to vector<8x1xi1>
    %114 = vector.broadcast %113 : vector<8x1xi1> to vector<8x16xi1>
    %115 = arith.select %114, %112, %102 : vector<8x16xi1>, vector<8x16xf32>
    %c0_106 = arith.constant 0 : index
    %c0_107 = arith.constant 0 : index
    %116 = vector.load %arg15[%c0_106, %c0_107] : memref<8x16xf32, #tpu.memory_space<vmem>>, vector<8x16xf32>
    tpu.vector_store %arg15[%c0_106, %c0_107], %115 {strides = array<i32>} : memref<8x16xf32, #tpu.memory_space<vmem>>, vector<8x16xf32>,
    %c0_108 = arith.constant 0 : index
    %c4_109 = arith.constant 4 : index
    %117 = vector.load %arg15[%c0_108, %c4_109] : memref<8x16xf32, #tpu.memory_space<vmem>>, vector<8x12xf32>
    %c0_110 = arith.constant 0 : index
    %c0_111 = arith.constant 0 : index
    %118 = vector.load %arg16[%c0_110, %c0_111] : memref<8x16xf32, #tpu.memory_space<vmem>>, vector<8x12xf32>
    tpu.vector_store %arg16[%c0_110, %c0_111], %117 {strides = array<i32>} : memref<8x16xf32, #tpu.memory_space<vmem>>, vector<8x12xf32>,
    %cst_112 = arith.constant 0.000000e+00 : f32
    %119 = vector.broadcast %cst_112 : f32 to vector<8x4xf32>
    %c0_113 = arith.constant 0 : index
    %c12_114 = arith.constant 12 : index
    %120 = vector.load %arg16[%c0_113, %c12_114] : memref<8x16xf32, #tpu.memory_space<vmem>>, vector<8x4xf32>
    tpu.vector_store %arg16[%c0_113, %c12_114], %119 {strides = array<i32>} : memref<8x16xf32, #tpu.memory_space<vmem>>, vector<8x4xf32>,
    %c4_i32_115 = arith.constant 4 : i32
    %121 = vector.broadcast %c4_i32_115 : i32 to vector<8x1xi32>
    %122 = arith.andi %89, %121 : vector<8x1xi32>
    %c0_i32_116 = arith.constant 0 : i32
    %123 = vector.broadcast %c0_i32_116 : i32 to vector<8x1xi32>
    %124 = arith.cmpi ne, %122, %123 : vector<8x1xi32>
    %c0_117 = arith.constant 0 : index
    %c0_118 = arith.constant 0 : index
    %125 = vector.load %arg16[%c0_117, %c0_118] : memref<8x16xf32, #tpu.memory_space<vmem>>, vector<8x16xf32>
    %126 = vector.shape_cast %124 : vector<8x1xi1> to vector<8x1xi1>
    %127 = vector.broadcast %126 : vector<8x1xi1> to vector<8x16xi1>
    %128 = arith.select %127, %125, %115 : vector<8x16xi1>, vector<8x16xf32>
    %129 = vector.extract_strided_slice %128 {offsets = [0, 0], sizes = [8, 8], strides = [1, 1]} : vector<8x16xf32> to vector<8x8xf32>
    %130 = arith.addf %85, %129 : vector<8x8xf32>
    %cst_119 = arith.constant 2.500000e-01 : f32
    %131 = vector.broadcast %cst_119 : f32 to vector<8x8xf32>
    %132 = arith.mulf %130, %131 : vector<8x8xf32>
    %cst_120 = arith.constant dense<0xFF800000> : vector<8xf32>
    %133 = vector.multi_reduction <maximumf>, %132, %cst_120 [1] : vector<8x8xf32> to vector<8xf32>
    %134 = vector.shape_cast %133 : vector<8xf32> to vector<8x1xf32>
    %135 = vector.broadcast %134 : vector<8x1xf32> to vector<8x8xf32>
    %136 = arith.subf %132, %135 : vector<8x8xf32>
    %137 = math.exp %136 : vector<8x8xf32>
    %cst_121 = arith.constant dense<0.000000e+00> : vector<8xf32>
    %138 = vector.multi_reduction <add>, %137, %cst_121 [1] : vector<8x8xf32> to vector<8xf32>
    %139 = vector.shape_cast %138 : vector<8xf32> to vector<8x1xf32>
    %140 = tpu.reciprocal %139 {approx = true} : vector<8x1xf32> -> vector<8x1xf32>
    %141 = vector.broadcast %140 : vector<8x1xf32> to vector<8x8xf32>
    %142 = arith.mulf %137, %141 : vector<8x8xf32>
    %143 = arith.mulf %142, %15 : vector<8x8xf32>
    %cst_122 = arith.constant dense<0.000000e+00> : vector<8x16xf32>
    %144 = tpu.matmul %143, %83, %cst_122 {dimension_numbers = #tpu.dot_dimension_numbers<[1], [0], [0], [1], [0, 0, 1, 1], [], []>} : vector<8x8xf32>, vector<8x16xf32>, vector<8x16xf32> -> vector<8x16xf32>
    %c0_123 = arith.constant 0 : index
    %c16_124 = arith.constant 16 : index
    %145 = vector.load %arg14[%c0_123, %c16_124] : memref<8x64xf32, #tpu.memory_space<vmem>>, vector<8x16xf32>
    tpu.vector_store %arg14[%c0_123, %c16_124], %144 {strides = array<i32>} : memref<8x64xf32, #tpu.memory_space<vmem>>, vector<8x16xf32>,
    %c0_125 = arith.constant 0 : index
    %c32 = arith.constant 32 : index
    %146 = vector.load %arg10[%c0_125, %c32] : memref<8x64xf32, #tpu.memory_space<vmem>>, vector<8x16xf32>
    %c0_126 = arith.constant 0 : index
    %c32_127 = arith.constant 32 : index
    %147 = vector.load %arg11[%c0_126, %c32_127] : memref<8x64xf32, #tpu.memory_space<vmem>>, vector<8x16xf32>
    %c0_128 = arith.constant 0 : index
    %c32_129 = arith.constant 32 : index
    %148 = vector.load %arg12[%c0_128, %c32_129] : memref<8x64xf32, #tpu.memory_space<vmem>>, vector<8x16xf32>
    %c0_130 = arith.constant 0 : index
    %c32_131 = arith.constant 32 : index
    %149 = vector.load %arg13[%c0_130, %c32_131] : memref<8x64xf32, #tpu.memory_space<vmem>>, vector<8x16xf32>
    %cst_132 = arith.constant dense<0.000000e+00> : vector<8x8xf32>
    %150 = tpu.matmul %146, %147, %cst_132 {dimension_numbers = #tpu.dot_dimension_numbers<[1], [1], [0], [0], [0, 0, 1, 0], [], []>} : vector<8x16xf32>, vector<8x16xf32>, vector<8x8xf32> -> vector<8x8xf32>
    %cst_133 = arith.constant dense<0.000000e+00> : vector<8x16xf32>
    %151 = tpu.matmul %149, %14, %cst_133 {dimension_numbers = #tpu.dot_dimension_numbers<[1], [1], [0], [0], [0, 0, 1, 0], [], []>} : vector<8x16xf32>, vector<16x16xf32>, vector<8x16xf32> -> vector<8x16xf32>
    %152 = tpu.iota {dimensions = array<i32: 0>} : vector<8x1xi32>
    %c7_i32_134 = arith.constant 7 : i32
    %153 = vector.broadcast %c7_i32_134 : i32 to vector<8x1xi32>
    %154 = arith.subi %153, %152 : vector<8x1xi32>
    %c0_135 = arith.constant 0 : index
    %c0_136 = arith.constant 0 : index
    %155 = vector.load %arg15[%c0_135, %c0_136] : memref<8x16xf32, #tpu.memory_space<vmem>>, vector<8x16xf32>
    tpu.vector_store %arg15[%c0_135, %c0_136], %151 {strides = array<i32>} : memref<8x16xf32, #tpu.memory_space<vmem>>, vector<8x16xf32>,
    %c0_137 = arith.constant 0 : index
    %c1_138 = arith.constant 1 : index
    %156 = vector.load %arg15[%c0_137, %c1_138] : memref<8x16xf32, #tpu.memory_space<vmem>>, vector<8x15xf32>
    %c0_139 = arith.constant 0 : index
    %c0_140 = arith.constant 0 : index
    %157 = vector.load %arg16[%c0_139, %c0_140] : memref<8x16xf32, #tpu.memory_space<vmem>>, vector<8x15xf32>
    tpu.vector_store %arg16[%c0_139, %c0_140], %156 {strides = array<i32>} : memref<8x16xf32, #tpu.memory_space<vmem>>, vector<8x15xf32>,
    %cst_141 = arith.constant 0.000000e+00 : f32
    %158 = vector.broadcast %cst_141 : f32 to vector<8x1xf32>
    %c0_142 = arith.constant 0 : index
    %c15_143 = arith.constant 15 : index
    %159 = vector.load %arg16[%c0_142, %c15_143] : memref<8x16xf32, #tpu.memory_space<vmem>>, vector<8x1xf32>
    tpu.vector_store %arg16[%c0_142, %c15_143], %158 {strides = array<i32>} : memref<8x16xf32, #tpu.memory_space<vmem>>, vector<8x1xf32>,
    %c1_i32_144 = arith.constant 1 : i32
    %160 = vector.broadcast %c1_i32_144 : i32 to vector<8x1xi32>
    %161 = arith.andi %154, %160 : vector<8x1xi32>
    %c0_i32_145 = arith.constant 0 : i32
    %162 = vector.broadcast %c0_i32_145 : i32 to vector<8x1xi32>
    %163 = arith.cmpi ne, %161, %162 : vector<8x1xi32>
    %c0_146 = arith.constant 0 : index
    %c0_147 = arith.constant 0 : index
    %164 = vector.load %arg16[%c0_146, %c0_147] : memref<8x16xf32, #tpu.memory_space<vmem>>, vector<8x16xf32>
    %165 = vector.shape_cast %163 : vector<8x1xi1> to vector<8x1xi1>
    %166 = vector.broadcast %165 : vector<8x1xi1> to vector<8x16xi1>
    %167 = arith.select %166, %164, %151 : vector<8x16xi1>, vector<8x16xf32>
    %c0_148 = arith.constant 0 : index
    %c0_149 = arith.constant 0 : index
    %168 = vector.load %arg15[%c0_148, %c0_149] : memref<8x16xf32, #tpu.memory_space<vmem>>, vector<8x16xf32>
    tpu.vector_store %arg15[%c0_148, %c0_149], %167 {strides = array<i32>} : memref<8x16xf32, #tpu.memory_space<vmem>>, vector<8x16xf32>,
    %c0_150 = arith.constant 0 : index
    %c2_151 = arith.constant 2 : index
    %169 = vector.load %arg15[%c0_150, %c2_151] : memref<8x16xf32, #tpu.memory_space<vmem>>, vector<8x14xf32>
    %c0_152 = arith.constant 0 : index
    %c0_153 = arith.constant 0 : index
    %170 = vector.load %arg16[%c0_152, %c0_153] : memref<8x16xf32, #tpu.memory_space<vmem>>, vector<8x14xf32>
    tpu.vector_store %arg16[%c0_152, %c0_153], %169 {strides = array<i32>} : memref<8x16xf32, #tpu.memory_space<vmem>>, vector<8x14xf32>,
    %cst_154 = arith.constant 0.000000e+00 : f32
    %171 = vector.broadcast %cst_154 : f32 to vector<8x2xf32>
    %c0_155 = arith.constant 0 : index
    %c14_156 = arith.constant 14 : index
    %172 = vector.load %arg16[%c0_155, %c14_156] : memref<8x16xf32, #tpu.memory_space<vmem>>, vector<8x2xf32>
    tpu.vector_store %arg16[%c0_155, %c14_156], %171 {strides = array<i32>} : memref<8x16xf32, #tpu.memory_space<vmem>>, vector<8x2xf32>,
    %c2_i32_157 = arith.constant 2 : i32
    %173 = vector.broadcast %c2_i32_157 : i32 to vector<8x1xi32>
    %174 = arith.andi %154, %173 : vector<8x1xi32>
    %c0_i32_158 = arith.constant 0 : i32
    %175 = vector.broadcast %c0_i32_158 : i32 to vector<8x1xi32>
    %176 = arith.cmpi ne, %174, %175 : vector<8x1xi32>
    %c0_159 = arith.constant 0 : index
    %c0_160 = arith.constant 0 : index
    %177 = vector.load %arg16[%c0_159, %c0_160] : memref<8x16xf32, #tpu.memory_space<vmem>>, vector<8x16xf32>
    %178 = vector.shape_cast %176 : vector<8x1xi1> to vector<8x1xi1>
    %179 = vector.broadcast %178 : vector<8x1xi1> to vector<8x16xi1>
    %180 = arith.select %179, %177, %167 : vector<8x16xi1>, vector<8x16xf32>
    %c0_161 = arith.constant 0 : index
    %c0_162 = arith.constant 0 : index
    %181 = vector.load %arg15[%c0_161, %c0_162] : memref<8x16xf32, #tpu.memory_space<vmem>>, vector<8x16xf32>
    tpu.vector_store %arg15[%c0_161, %c0_162], %180 {strides = array<i32>} : memref<8x16xf32, #tpu.memory_space<vmem>>, vector<8x16xf32>,
    %c0_163 = arith.constant 0 : index
    %c4_164 = arith.constant 4 : index
    %182 = vector.load %arg15[%c0_163, %c4_164] : memref<8x16xf32, #tpu.memory_space<vmem>>, vector<8x12xf32>
    %c0_165 = arith.constant 0 : index
    %c0_166 = arith.constant 0 : index
    %183 = vector.load %arg16[%c0_165, %c0_166] : memref<8x16xf32, #tpu.memory_space<vmem>>, vector<8x12xf32>
    tpu.vector_store %arg16[%c0_165, %c0_166], %182 {strides = array<i32>} : memref<8x16xf32, #tpu.memory_space<vmem>>, vector<8x12xf32>,
    %cst_167 = arith.constant 0.000000e+00 : f32
    %184 = vector.broadcast %cst_167 : f32 to vector<8x4xf32>
    %c0_168 = arith.constant 0 : index
    %c12_169 = arith.constant 12 : index
    %185 = vector.load %arg16[%c0_168, %c12_169] : memref<8x16xf32, #tpu.memory_space<vmem>>, vector<8x4xf32>
    tpu.vector_store %arg16[%c0_168, %c12_169], %184 {strides = array<i32>} : memref<8x16xf32, #tpu.memory_space<vmem>>, vector<8x4xf32>,
    %c4_i32_170 = arith.constant 4 : i32
    %186 = vector.broadcast %c4_i32_170 : i32 to vector<8x1xi32>
    %187 = arith.andi %154, %186 : vector<8x1xi32>
    %c0_i32_171 = arith.constant 0 : i32
    %188 = vector.broadcast %c0_i32_171 : i32 to vector<8x1xi32>
    %189 = arith.cmpi ne, %187, %188 : vector<8x1xi32>
    %c0_172 = arith.constant 0 : index
    %c0_173 = arith.constant 0 : index
    %190 = vector.load %arg16[%c0_172, %c0_173] : memref<8x16xf32, #tpu.memory_space<vmem>>, vector<8x16xf32>
    %191 = vector.shape_cast %189 : vector<8x1xi1> to vector<8x1xi1>
    %192 = vector.broadcast %191 : vector<8x1xi1> to vector<8x16xi1>
    %193 = arith.select %192, %190, %180 : vector<8x16xi1>, vector<8x16xf32>
    %194 = vector.extract_strided_slice %193 {offsets = [0, 0], sizes = [8, 8], strides = [1, 1]} : vector<8x16xf32> to vector<8x8xf32>
    %195 = arith.addf %150, %194 : vector<8x8xf32>
    %cst_174 = arith.constant 2.500000e-01 : f32
    %196 = vector.broadcast %cst_174 : f32 to vector<8x8xf32>
    %197 = arith.mulf %195, %196 : vector<8x8xf32>
    %cst_175 = arith.constant dense<0xFF800000> : vector<8xf32>
    %198 = vector.multi_reduction <maximumf>, %197, %cst_175 [1] : vector<8x8xf32> to vector<8xf32>
    %199 = vector.shape_cast %198 : vector<8xf32> to vector<8x1xf32>
    %200 = vector.broadcast %199 : vector<8x1xf32> to vector<8x8xf32>
    %201 = arith.subf %197, %200 : vector<8x8xf32>
    %202 = math.exp %201 : vector<8x8xf32>
    %cst_176 = arith.constant dense<0.000000e+00> : vector<8xf32>
    %203 = vector.multi_reduction <add>, %202, %cst_176 [1] : vector<8x8xf32> to vector<8xf32>
    %204 = vector.shape_cast %203 : vector<8xf32> to vector<8x1xf32>
    %205 = tpu.reciprocal %204 {approx = true} : vector<8x1xf32> -> vector<8x1xf32>
    %206 = vector.broadcast %205 : vector<8x1xf32> to vector<8x8xf32>
    %207 = arith.mulf %202, %206 : vector<8x8xf32>
    %208 = arith.mulf %207, %15 : vector<8x8xf32>
    %cst_177 = arith.constant dense<0.000000e+00> : vector<8x16xf32>
    %209 = tpu.matmul %208, %148, %cst_177 {dimension_numbers = #tpu.dot_dimension_numbers<[1], [0], [0], [1], [0, 0, 1, 1], [], []>} : vector<8x8xf32>, vector<8x16xf32>, vector<8x16xf32> -> vector<8x16xf32>
    %c0_178 = arith.constant 0 : index
    %c32_179 = arith.constant 32 : index
    %210 = vector.load %arg14[%c0_178, %c32_179] : memref<8x64xf32, #tpu.memory_space<vmem>>, vector<8x16xf32>
    tpu.vector_store %arg14[%c0_178, %c32_179], %209 {strides = array<i32>} : memref<8x64xf32, #tpu.memory_space<vmem>>, vector<8x16xf32>,
    %c0_180 = arith.constant 0 : index
    %c48 = arith.constant 48 : index
    %211 = vector.load %arg10[%c0_180, %c48] : memref<8x64xf32, #tpu.memory_space<vmem>>, vector<8x16xf32>
    %c0_181 = arith.constant 0 : index
    %c48_182 = arith.constant 48 : index
    %212 = vector.load %arg11[%c0_181, %c48_182] : memref<8x64xf32, #tpu.memory_space<vmem>>, vector<8x16xf32>
    %c0_183 = arith.constant 0 : index
    %c48_184 = arith.constant 48 : index
    %213 = vector.load %arg12[%c0_183, %c48_184] : memref<8x64xf32, #tpu.memory_space<vmem>>, vector<8x16xf32>
    %c0_185 = arith.constant 0 : index
    %c48_186 = arith.constant 48 : index
    %214 = vector.load %arg13[%c0_185, %c48_186] : memref<8x64xf32, #tpu.memory_space<vmem>>, vector<8x16xf32>
    %cst_187 = arith.constant dense<0.000000e+00> : vector<8x8xf32>
    %215 = tpu.matmul %211, %212, %cst_187 {dimension_numbers = #tpu.dot_dimension_numbers<[1], [1], [0], [0], [0, 0, 1, 0], [], []>} : vector<8x16xf32>, vector<8x16xf32>, vector<8x8xf32> -> vector<8x8xf32>
    %cst_188 = arith.constant dense<0.000000e+00> : vector<8x16xf32>
    %216 = tpu.matmul %214, %14, %cst_188 {dimension_numbers = #tpu.dot_dimension_numbers<[1], [1], [0], [0], [0, 0, 1, 0], [], []>} : vector<8x16xf32>, vector<16x16xf32>, vector<8x16xf32> -> vector<8x16xf32>
    %217 = tpu.iota {dimensions = array<i32: 0>} : vector<8x1xi32>
    %c7_i32_189 = arith.constant 7 : i32
    %218 = vector.broadcast %c7_i32_189 : i32 to vector<8x1xi32>
    %219 = arith.subi %218, %217 : vector<8x1xi32>
    %c0_190 = arith.constant 0 : index
    %c0_191 = arith.constant 0 : index
    %220 = vector.load %arg15[%c0_190, %c0_191] : memref<8x16xf32, #tpu.memory_space<vmem>>, vector<8x16xf32>
    tpu.vector_store %arg15[%c0_190, %c0_191], %216 {strides = array<i32>} : memref<8x16xf32, #tpu.memory_space<vmem>>, vector<8x16xf32>,
    %c0_192 = arith.constant 0 : index
    %c1_193 = arith.constant 1 : index
    %221 = vector.load %arg15[%c0_192, %c1_193] : memref<8x16xf32, #tpu.memory_space<vmem>>, vector<8x15xf32>
    %c0_194 = arith.constant 0 : index
    %c0_195 = arith.constant 0 : index
    %222 = vector.load %arg16[%c0_194, %c0_195] : memref<8x16xf32, #tpu.memory_space<vmem>>, vector<8x15xf32>
    tpu.vector_store %arg16[%c0_194, %c0_195], %221 {strides = array<i32>} : memref<8x16xf32, #tpu.memory_space<vmem>>, vector<8x15xf32>,
    %cst_196 = arith.constant 0.000000e+00 : f32
    %223 = vector.broadcast %cst_196 : f32 to vector<8x1xf32>
    %c0_197 = arith.constant 0 : index
    %c15_198 = arith.constant 15 : index
    %224 = vector.load %arg16[%c0_197, %c15_198] : memref<8x16xf32, #tpu.memory_space<vmem>>, vector<8x1xf32>
    tpu.vector_store %arg16[%c0_197, %c15_198], %223 {strides = array<i32>} : memref<8x16xf32, #tpu.memory_space<vmem>>, vector<8x1xf32>,
    %c1_i32_199 = arith.constant 1 : i32
    %225 = vector.broadcast %c1_i32_199 : i32 to vector<8x1xi32>
    %226 = arith.andi %219, %225 : vector<8x1xi32>
    %c0_i32_200 = arith.constant 0 : i32
    %227 = vector.broadcast %c0_i32_200 : i32 to vector<8x1xi32>
    %228 = arith.cmpi ne, %226, %227 : vector<8x1xi32>
    %c0_201 = arith.constant 0 : index
    %c0_202 = arith.constant 0 : index
    %229 = vector.load %arg16[%c0_201, %c0_202] : memref<8x16xf32, #tpu.memory_space<vmem>>, vector<8x16xf32>
    %230 = vector.shape_cast %228 : vector<8x1xi1> to vector<8x1xi1>
    %231 = vector.broadcast %230 : vector<8x1xi1> to vector<8x16xi1>
    %232 = arith.select %231, %229, %216 : vector<8x16xi1>, vector<8x16xf32>
    %c0_203 = arith.constant 0 : index
    %c0_204 = arith.constant 0 : index
    %233 = vector.load %arg15[%c0_203, %c0_204] : memref<8x16xf32, #tpu.memory_space<vmem>>, vector<8x16xf32>
    tpu.vector_store %arg15[%c0_203, %c0_204], %232 {strides = array<i32>} : memref<8x16xf32, #tpu.memory_space<vmem>>, vector<8x16xf32>,
    %c0_205 = arith.constant 0 : index
    %c2_206 = arith.constant 2 : index
    %234 = vector.load %arg15[%c0_205, %c2_206] : memref<8x16xf32, #tpu.memory_space<vmem>>, vector<8x14xf32>
    %c0_207 = arith.constant 0 : index
    %c0_208 = arith.constant 0 : index
    %235 = vector.load %arg16[%c0_207, %c0_208] : memref<8x16xf32, #tpu.memory_space<vmem>>, vector<8x14xf32>
    tpu.vector_store %arg16[%c0_207, %c0_208], %234 {strides = array<i32>} : memref<8x16xf32, #tpu.memory_space<vmem>>, vector<8x14xf32>,
    %cst_209 = arith.constant 0.000000e+00 : f32
    %236 = vector.broadcast %cst_209 : f32 to vector<8x2xf32>
    %c0_210 = arith.constant 0 : index
    %c14_211 = arith.constant 14 : index
    %237 = vector.load %arg16[%c0_210, %c14_211] : memref<8x16xf32, #tpu.memory_space<vmem>>, vector<8x2xf32>
    tpu.vector_store %arg16[%c0_210, %c14_211], %236 {strides = array<i32>} : memref<8x16xf32, #tpu.memory_space<vmem>>, vector<8x2xf32>,
    %c2_i32_212 = arith.constant 2 : i32
    %238 = vector.broadcast %c2_i32_212 : i32 to vector<8x1xi32>
    %239 = arith.andi %219, %238 : vector<8x1xi32>
    %c0_i32_213 = arith.constant 0 : i32
    %240 = vector.broadcast %c0_i32_213 : i32 to vector<8x1xi32>
    %241 = arith.cmpi ne, %239, %240 : vector<8x1xi32>
    %c0_214 = arith.constant 0 : index
    %c0_215 = arith.constant 0 : index
    %242 = vector.load %arg16[%c0_214, %c0_215] : memref<8x16xf32, #tpu.memory_space<vmem>>, vector<8x16xf32>
    %243 = vector.shape_cast %241 : vector<8x1xi1> to vector<8x1xi1>
    %244 = vector.broadcast %243 : vector<8x1xi1> to vector<8x16xi1>
    %245 = arith.select %244, %242, %232 : vector<8x16xi1>, vector<8x16xf32>
    %c0_216 = arith.constant 0 : index
    %c0_217 = arith.constant 0 : index
    %246 = vector.load %arg15[%c0_216, %c0_217] : memref<8x16xf32, #tpu.memory_space<vmem>>, vector<8x16xf32>
    tpu.vector_store %arg15[%c0_216, %c0_217], %245 {strides = array<i32>} : memref<8x16xf32, #tpu.memory_space<vmem>>, vector<8x16xf32>,
    %c0_218 = arith.constant 0 : index
    %c4_219 = arith.constant 4 : index
    %247 = vector.load %arg15[%c0_218, %c4_219] : memref<8x16xf32, #tpu.memory_space<vmem>>, vector<8x12xf32>
    %c0_220 = arith.constant 0 : index
    %c0_221 = arith.constant 0 : index
    %248 = vector.load %arg16[%c0_220, %c0_221] : memref<8x16xf32, #tpu.memory_space<vmem>>, vector<8x12xf32>
    tpu.vector_store %arg16[%c0_220, %c0_221], %247 {strides = array<i32>} : memref<8x16xf32, #tpu.memory_space<vmem>>, vector<8x12xf32>,
    %cst_222 = arith.constant 0.000000e+00 : f32
    %249 = vector.broadcast %cst_222 : f32 to vector<8x4xf32>
    %c0_223 = arith.constant 0 : index
    %c12_224 = arith.constant 12 : index
    %250 = vector.load %arg16[%c0_223, %c12_224] : memref<8x16xf32, #tpu.memory_space<vmem>>, vector<8x4xf32>
    tpu.vector_store %arg16[%c0_223, %c12_224], %249 {strides = array<i32>} : memref<8x16xf32, #tpu.memory_space<vmem>>, vector<8x4xf32>,
    %c4_i32_225 = arith.constant 4 : i32
    %251 = vector.broadcast %c4_i32_225 : i32 to vector<8x1xi32>
    %252 = arith.andi %219, %251 : vector<8x1xi32>
    %c0_i32_226 = arith.constant 0 : i32
    %253 = vector.broadcast %c0_i32_226 : i32 to vector<8x1xi32>
    %254 = arith.cmpi ne, %252, %253 : vector<8x1xi32>
    %c0_227 = arith.constant 0 : index
    %c0_228 = arith.constant 0 : index
    %255 = vector.load %arg16[%c0_227, %c0_228] : memref<8x16xf32, #tpu.memory_space<vmem>>, vector<8x16xf32>
    %256 = vector.shape_cast %254 : vector<8x1xi1> to vector<8x1xi1>
    %257 = vector.broadcast %256 : vector<8x1xi1> to vector<8x16xi1>
    %258 = arith.select %257, %255, %245 : vector<8x16xi1>, vector<8x16xf32>
    %259 = vector.extract_strided_slice %258 {offsets = [0, 0], sizes = [8, 8], strides = [1, 1]} : vector<8x16xf32> to vector<8x8xf32>
    %260 = arith.addf %215, %259 : vector<8x8xf32>
    %cst_229 = arith.constant 2.500000e-01 : f32
    %261 = vector.broadcast %cst_229 : f32 to vector<8x8xf32>
    %262 = arith.mulf %260, %261 : vector<8x8xf32>
    %cst_230 = arith.constant dense<0xFF800000> : vector<8xf32>
    %263 = vector.multi_reduction <maximumf>, %262, %cst_230 [1] : vector<8x8xf32> to vector<8xf32>
    %264 = vector.shape_cast %263 : vector<8xf32> to vector<8x1xf32>
    %265 = vector.broadcast %264 : vector<8x1xf32> to vector<8x8xf32>
    %266 = arith.subf %262, %265 : vector<8x8xf32>
    %267 = math.exp %266 : vector<8x8xf32>
    %cst_231 = arith.constant dense<0.000000e+00> : vector<8xf32>
    %268 = vector.multi_reduction <add>, %267, %cst_231 [1] : vector<8x8xf32> to vector<8xf32>
    %269 = vector.shape_cast %268 : vector<8xf32> to vector<8x1xf32>
    %270 = tpu.reciprocal %269 {approx = true} : vector<8x1xf32> -> vector<8x1xf32>
    %271 = vector.broadcast %270 : vector<8x1xf32> to vector<8x8xf32>
    %272 = arith.mulf %267, %271 : vector<8x8xf32>
    %273 = arith.mulf %272, %15 : vector<8x8xf32>
    %cst_232 = arith.constant dense<0.000000e+00> : vector<8x16xf32>
    %274 = tpu.matmul %273, %213, %cst_232 {dimension_numbers = #tpu.dot_dimension_numbers<[1], [0], [0], [1], [0, 0, 1, 1], [], []>} : vector<8x8xf32>, vector<8x16xf32>, vector<8x16xf32> -> vector<8x16xf32>
    %c0_233 = arith.constant 0 : index
    %c48_234 = arith.constant 48 : index
    %275 = vector.load %arg14[%c0_233, %c48_234] : memref<8x64xf32, #tpu.memory_space<vmem>>, vector<8x16xf32>
    tpu.vector_store %arg14[%c0_233, %c48_234], %274 {strides = array<i32>} : memref<8x64xf32, #tpu.memory_space<vmem>>, vector<8x16xf32>,
    %c0_235 = arith.constant 0 : index
    %c0_236 = arith.constant 0 : index
    %276 = vector.load %arg14[%c0_235, %c0_236] : memref<8x64xf32, #tpu.memory_space<vmem>>, vector<8x64xf32>
    %c0_237 = arith.constant 0 : index
    %c0_238 = arith.constant 0 : index
    %277 = vector.load %arg8[%c0_237, %c0_238] : memref<64x128xf32, #tpu.memory_space<vmem>>, vector<64x128xf32>
    %cst_239 = arith.constant dense<0.000000e+00> : vector<8x128xf32>
    %278 = tpu.matmul %276, %277, %cst_239 {dimension_numbers = #tpu.dot_dimension_numbers<[1], [0], [0], [1], [0, 0, 1, 1], [], []>} : vector<8x64xf32>, vector<64x128xf32>, vector<8x128xf32> -> vector<8x128xf32>
    %c0_240 = arith.constant 0 : index
    %c0_241 = arith.constant 0 : index
    %c0_242 = arith.constant 0 : index
    %279 = vector.load %arg9[%c0_240, %c0_241, %c0_242] : memref<1x8x128xf32, #tpu.memory_space<vmem>>, vector<1x8x128xf32>
    %280 = vector.shape_cast %279 : vector<1x8x128xf32> to vector<8x128xf32>
    %281 = vector.shape_cast %278 : vector<8x128xf32> to vector<1x8x128xf32>
    tpu.vector_store %arg9[%c0_240, %c0_241, %c0_242], %281 {strides = array<i32>} : memref<1x8x128xf32, #tpu.memory_space<vmem>>, vector<1x8x128xf32>,
    return
  }
  func.func @transform_0(%arg0: i32) -> (i32, i32, i32) {
    %c0_i32 = arith.constant 0 : i32
    %c0_i32_0 = arith.constant 0 : i32
    %c0_i32_1 = arith.constant 0 : i32
    return %arg0, %c0_i32, %c0_i32_0 : i32, i32, i32
  }
  func.func @transform_1(%arg0: i32) -> (i32, i32) {
    %c0_i32 = arith.constant 0 : i32
    %c0_i32_0 = arith.constant 0 : i32
    %c0_i32_1 = arith.constant 0 : i32
    return %c0_i32, %c0_i32_0 : i32, i32
  }
  func.func @transform_2(%arg0: i32) -> (i32, i32) {
    %c0_i32 = arith.constant 0 : i32
    %c0_i32_0 = arith.constant 0 : i32
    %c0_i32_1 = arith.constant 0 : i32
    return %c0_i32, %c0_i32_0 : i32, i32
  }
  func.func @transform_3(%arg0: i32) -> (i32, i32) {
    %c0_i32 = arith.constant 0 : i32
    %c0_i32_0 = arith.constant 0 : i32
    %c0_i32_1 = arith.constant 0 : i32
    return %c0_i32, %c0_i32_0 : i32, i32
  }
  func.func @transform_4(%arg0: i32) -> (i32, i32) {
    %c0_i32 = arith.constant 0 : i32
    %c0_i32_0 = arith.constant 0 : i32
    %c0_i32_1 = arith.constant 0 : i32
    return %c0_i32, %c0_i32_0 : i32, i32
  }
  func.func @transform_5(%arg0: i32) -> (i32, i32) {
    %c0_i32 = arith.constant 0 : i32
    %c0_i32_0 = arith.constant 0 : i32
    %c0_i32_1 = arith.constant 0 : i32
    return %c0_i32, %c0_i32_0 : i32, i32
  }
  func.func @transform_6(%arg0: i32) -> (i32, i32) {
    %c0_i32 = arith.constant 0 : i32
    %c0_i32_0 = arith.constant 0 : i32
    %c0_i32_1 = arith.constant 0 : i32
    return %c0_i32, %c0_i32_0 : i32, i32
  }
  func.func @transform_7(%arg0: i32) -> (i32, i32) {
    %c0_i32 = arith.constant 0 : i32
    %c0_i32_0 = arith.constant 0 : i32
    %c0_i32_1 = arith.constant 0 : i32
    return %c0_i32, %c0_i32_0 : i32, i32
  }
  func.func @transform_8(%arg0: i32) -> (i32, i32, i32) {
    %c0_i32 = arith.constant 0 : i32
    %c0_i32_0 = arith.constant 0 : i32
    %c0_i32_1 = arith.constant 0 : i32
    return %arg0, %c0_i32, %c0_i32_0 : i32, i32, i32
  }
}

</mosaic_0001>

<llo_original>
// kernel: tpu_custom_call.1
$region0: #{tpu_custom_call.1}
  #allocation0 [shape = 'u32[]', space=smem, size = 0x4, offset = 0x4, fixed_abs, tag = 'smem constant byte address 0x4 - core index']
  #allocation1 [shape = 'u32[144,128]{1,0:T(1,128)}', space=vmem, size = 0x12000, scoped, tag = 'internal scratch']
  #allocation2 [shape = 'f32[8,64]{1,0:T(8,128)}', space=vmem, size = 0x1000, scoped, tag = 'scratch operand']
  #allocation3 [shape = 'f32[8,64]{1,0:T(8,128)}', space=vmem, size = 0x1000, scoped, tag = 'scratch operand']
  #allocation4 [shape = 'f32[8,64]{1,0:T(8,128)}', space=vmem, size = 0x1000, scoped, tag = 'scratch operand']
  #allocation5 [shape = 'f32[8,64]{1,0:T(8,128)}', space=vmem, size = 0x1000, scoped, tag = 'scratch operand']
  #allocation6 [shape = 'f32[8,64]{1,0:T(8,128)}', space=vmem, size = 0x1000, scoped, tag = 'scratch operand']
  #allocation7 [shape = 'f32[8,16]{1,0:T(8,128)}', space=vmem, size = 0x1000, scoped, tag = 'scratch operand']
  #allocation8 [shape = 'f32[8,16]{1,0:T(8,128)}', space=vmem, size = 0x1000, scoped, tag = 'scratch operand']
  %s0 = inlined_call_operand.hbm [shape: f32[2,8,32], index: 0, kind: input, shape index: {}]
  %s1 = inlined_call_operand.hbm [shape: f32[32,64], index: 1, kind: input, shape index: {}]
  %s2 = inlined_call_operand.hbm [shape: f32[32,64], index: 2, kind: input, shape index: {}]
  %s3 = inlined_call_operand.hbm [shape: f32[32,64], index: 3, kind: input, shape index: {}]
  %s4 = inlined_call_operand.hbm [shape: f32[32,64], index: 4, kind: input, shape index: {}]
  %s5 = inlined_call_operand.vmem [shape: f32[16,16], index: 5, kind: input, shape index: {}]
  %s6 = inlined_call_operand.hbm [shape: f32[8,8], index: 6, kind: input, shape index: {}]
  %s7 = inlined_call_operand.hbm [shape: f32[64,128], index: 7, kind: input, shape index: {}]
  %s8 = inlined_call_operand.hbm [shape: f32[2,8,128], index: 8, kind: output, shape index: {}]
  %s9 = sld [smem:[#allocation0]]
  $region93: #{tpu_custom_call.1} parent=0
    _
  %s11 = ssub.s32 1, %s9
  %s12 = scalar_select 0, %s11, %s9
  $region1: #{tpu_custom_call.1} parent=0
    #allocation9 [shape = 'u8[8192]{0}', space=vmem, size = 0x2000, scoped, tag = 'input window, operand 0']
    #allocation10 [shape = 's32[2]{0}', space=sflag, size = 0x8, scoped, tag = 'scoped memory for tpu_custom_call.1']
    #allocation11 [shape = 's32[2]{0}', space=sflag, size = 0x8, scoped, tag = 'scoped memory for tpu_custom_call.1']
    #allocation12 [shape = 'u8[16384]{0}', space=vmem, size = 0x4000, scoped, tag = 'input window, operand 1, single buffered']
    #allocation13 [shape = 's32[1]{0}', space=sflag, size = 0x4, scoped, tag = 'scoped memory for tpu_custom_call.1']
    #allocation14 [shape = 'u8[16384]{0}', space=vmem, size = 0x4000, scoped, tag = 'input window, operand 2, single buffered']
    #allocation15 [shape = 'u8[16384]{0}', space=vmem, size = 0x4000, scoped, tag = 'input window, operand 3, single buffered']
    #allocation16 [shape = 's32[1]{0}', space=sflag, size = 0x4, scoped, tag = 'scoped memory for tpu_custom_call.1']
    #allocation17 [shape = 'u8[16384]{0}', space=vmem, size = 0x4000, scoped, tag = 'input window, operand 4, single buffered']
    #allocation18 [shape = 'u8[4096]{0}', space=vmem, size = 0x1000, scoped, tag = 'input window, operand 6, single buffered']
    #allocation19 [shape = 's32[1]{0}', space=sflag, size = 0x4, scoped, tag = 'scoped memory for tpu_custom_call.1']
    #allocation20 [shape = 'u8[32768]{0}', space=vmem, size = 0x8000, scoped, tag = 'input window, operand 7, single buffered']
    #allocation21 [shape = 'u8[8192]{0}', space=vmem, size = 0x2000, scoped, tag = 'output window, operand 0']
    %13 = vsyncpa [#allocation10], 0
    %s14 = scalar_lea.sflag [#allocation10], 1
    %15 = vsyncpa %s14, 0
    %16 = vsyncpa [#allocation13], 0
    %17 = vsyncpa [#allocation16], 0
    %18 = vsyncpa [#allocation19], 0
    %19 = vsyncpa [#allocation11], 0
    %s20 = scalar_lea.sflag [#allocation11], 1
    %21 = vsyncpa %s20, 0
    loop: start=0, step=1, limit=4
    $region2: #{tpu_custom_call.1} parent=1 // loop_pre_header
      _
    $region3: #{tpu_custom_call.1} parent=1 // loop_header
      %s23 = sphi 0, %s27
      %p24 = scmp.ge.s32.totalorder %s23, 4
      %s33 = sphi 0, %s35
      %s36 = sphi 0, %s33
      %s37 = sphi 0, %s36
      %s53 = sphi 0, %s37
      %s57 = sphi 0, %s57
      %s59 = sphi 0, %s57
      %s60 = sphi 0, %s59
      %s74 = sphi 0, %s60
      %s78 = sphi 0, %s78
      %s80 = sphi 0, %s78
      %s81 = sphi 0, %s80
      %s95 = sphi 0, %s81
      %s99 = sphi 0, %s99
      %s101 = sphi 0, %s99
      %s102 = sphi 0, %s101
      %s116 = sphi 0, %s102
      %s120 = sphi 0, %s120
      %s122 = sphi 0, %s120
      %s123 = sphi 0, %s122
      %s137 = sphi 0, %s123
      %s141 = sphi 0, %s141
      %s143 = sphi 0, %s141
      %s144 = sphi 0, %s143
      %s158 = sphi 0, %s144
      %s162 = sphi 0, %s162
      %s164 = sphi 0, %s162
      %s165 = sphi 0, %s164
      %s179 = sphi 0, %s165
      %s183 = sphi 0, %s183
      %s185 = sphi 0, %s183
      %s186 = sphi 0, %s185
      %s200 = sphi 0, %s186
      %s206 = sphi 0, %s208
      %s209 = sphi 0, %s206
      %s210 = sphi 0, %s209
      %s226 = sphi 0, %s210
    $region4: #{tpu_custom_call.1} parent=1 // loop_header_branch
      %26 = sbr.rel (%p24) target = $region8
    $region5: #{tpu_custom_call.1} parent=1 // loop_body
      %s28 = ssub.s32 %s23, 1
      %s29 = ssub.s32 %s23, 2
      %s30 = sadd.s32 %s23, 1
      %s31 = ssub.s32 %s23, %s30
      %p32 = scmp.eq.s32.totalorder %s31, 0
      %s34 = sadd.s32 %s33, 1
      %s35 = scalar_select %p32, %s33, %s34
      %p38 = pneg %p32
      %p39 = scmp.eq.s32.totalorder %s23, 1
      %p40 = por %p38, %p39
      %p41 = scmp.ne.s32.totalorder %s33, %s36
      %p42 = scmp.eq.s32.totalorder %s23, 0
      %p43 = por %p41, %p42
      %p44 = scmp.ne.s32.totalorder %s33, %s36
      %p45 = scmp.eq.s32.totalorder %s28, 1
      %p46 = por %p44, %p45
      %p47 = scmp.ne.s32.totalorder %s36, %s37
      %p48 = scmp.eq.s32.totalorder %s28, 0
      %p49 = por %p47, %p48
      %p50 = scmp.ne.s32.totalorder %s36, %s37
      %p51 = scmp.eq.s32.totalorder %s29, 1
      %p52 = por %p50, %p51
      %p54 = scmp.ne.s32.totalorder %s37, %s53
      %p55 = scmp.eq.s32.totalorder %s29, 0
      %p56 = por %p54, %p55
      %s58 = sadd.s32 %s57, 1
      %p61 = scmp.eq.s32.totalorder %s23, 1
      %p62 = scmp.ne.s32.totalorder %s57, %s59
      %p63 = scmp.eq.s32.totalorder %s23, 0
      %p64 = por %p62, %p63
      %p65 = scmp.ne.s32.totalorder %s57, %s59
      %p66 = scmp.eq.s32.totalorder %s28, 1
      %p67 = por %p65, %p66
      %p68 = scmp.ne.s32.totalorder %s59, %s60
      %p69 = scmp.eq.s32.totalorder %s28, 0
      %p70 = por %p68, %p69
      %p71 = scmp.ne.s32.totalorder %s59, %s60
      %p72 = scmp.eq.s32.totalorder %s29, 1
      %p73 = por %p71, %p72
      %p75 = scmp.ne.s32.totalorder %s60, %s74
      %p76 = scmp.eq.s32.totalorder %s29, 0
      %p77 = por %p75, %p76
      %s79 = sadd.s32 %s78, 1
      %p82 = scmp.eq.s32.totalorder %s23, 1
      %p83 = scmp.ne.s32.totalorder %s78, %s80
      %p84 = scmp.eq.s32.totalorder %s23, 0
      %p85 = por %p83, %p84
      %p86 = scmp.ne.s32.totalorder %s78, %s80
      %p87 = scmp.eq.s32.totalorder %s28, 1
      %p88 = por %p86, %p87
      %p89 = scmp.ne.s32.totalorder %s80, %s81
      %p90 = scmp.eq.s32.totalorder %s28, 0
      %p91 = por %p89, %p90
      %p92 = scmp.ne.s32.totalorder %s80, %s81
      %p93 = scmp.eq.s32.totalorder %s29, 1
      %p94 = por %p92, %p93
      %p96 = scmp.ne.s32.totalorder %s81, %s95
      %p97 = scmp.eq.s32.totalorder %s29, 0
      %p98 = por %p96, %p97
      %s100 = sadd.s32 %s99, 1
      %p103 = scmp.eq.s32.totalorder %s23, 1
      %p104 = scmp.ne.s32.totalorder %s99, %s101
      %p105 = scmp.eq.s32.totalorder %s23, 0
      %p106 = por %p104, %p105
      %p107 = scmp.ne.s32.totalorder %s99, %s101
      %p108 = scmp.eq.s32.totalorder %s28, 1
      %p109 = por %p107, %p108
      %p110 = scmp.ne.s32.totalorder %s101, %s102
      %p111 = scmp.eq.s32.totalorder %s28, 0
      %p112 = por %p110, %p111
      %p113 = scmp.ne.s32.totalorder %s101, %s102
      %p114 = scmp.eq.s32.totalorder %s29, 1
      %p115 = por %p113, %p114
      %p117 = scmp.ne.s32.totalorder %s102, %s116
      %p118 = scmp.eq.s32.totalorder %s29, 0
      %p119 = por %p117, %p118
      %s121 = sadd.s32 %s120, 1
      %p124 = scmp.eq.s32.totalorder %s23, 1
      %p125 = scmp.ne.s32.totalorder %s120, %s122
      %p126 = scmp.eq.s32.totalorder %s23, 0
      %p127 = por %p125, %p126
      %p128 = scmp.ne.s32.totalorder %s120, %s122
      %p129 = scmp.eq.s32.totalorder %s28, 1
      %p130 = por %p128, %p129
      %p131 = scmp.ne.s32.totalorder %s122, %s123
      %p132 = scmp.eq.s32.totalorder %s28, 0
      %p133 = por %p131, %p132
      %p134 = scmp.ne.s32.totalorder %s122, %s123
      %p135 = scmp.eq.s32.totalorder %s29, 1
      %p136 = por %p134, %p135
      %p138 = scmp.ne.s32.totalorder %s123, %s137
      %p139 = scmp.eq.s32.totalorder %s29, 0
      %p140 = por %p138, %p139
      %s142 = sadd.s32 %s141, 1
      %p145 = scmp.eq.s32.totalorder %s23, 1
      %p146 = scmp.ne.s32.totalorder %s141, %s143
      %p147 = scmp.eq.s32.totalorder %s23, 0
      %p148 = por %p146, %p147
      %p149 = scmp.ne.s32.totalorder %s141, %s143
      %p150 = scmp.eq.s32.totalorder %s28, 1
      %p151 = por %p149, %p150
      %p152 = scmp.ne.s32.totalorder %s143, %s144
      %p153 = scmp.eq.s32.totalorder %s28, 0
      %p154 = por %p152, %p153
      %p155 = scmp.ne.s32.totalorder %s143, %s144
      %p156 = scmp.eq.s32.totalorder %s29, 1
      %p157 = por %p155, %p156
      %p159 = scmp.ne.s32.totalorder %s144, %s158
      %p160 = scmp.eq.s32.totalorder %s29, 0
      %p161 = por %p159, %p160
      %s163 = sadd.s32 %s162, 1
      %p166 = scmp.eq.s32.totalorder %s23, 1
      %p167 = scmp.ne.s32.totalorder %s162, %s164
      %p168 = scmp.eq.s32.totalorder %s23, 0
      %p169 = por %p167, %p168
      %p170 = scmp.ne.s32.totalorder %s162, %s164
      %p171 = scmp.eq.s32.totalorder %s28, 1
      %p172 = por %p170, %p171
      %p173 = scmp.ne.s32.totalorder %s164, %s165
      %p174 = scmp.eq.s32.totalorder %s28, 0
      %p175 = por %p173, %p174
      %p176 = scmp.ne.s32.totalorder %s164, %s165
      %p177 = scmp.eq.s32.totalorder %s29, 1
      %p178 = por %p176, %p177
      %p180 = scmp.ne.s32.totalorder %s165, %s179
      %p181 = scmp.eq.s32.totalorder %s29, 0
      %p182 = por %p180, %p181
      %s184 = sadd.s32 %s183, 1
      %p187 = scmp.eq.s32.totalorder %s23, 1
      %p188 = scmp.ne.s32.totalorder %s183, %s185
      %p189 = scmp.eq.s32.totalorder %s23, 0
      %p190 = por %p188, %p189
      %p191 = scmp.ne.s32.totalorder %s183, %s185
      %p192 = scmp.eq.s32.totalorder %s28, 1
      %p193 = por %p191, %p192
      %p194 = scmp.ne.s32.totalorder %s185, %s186
      %p195 = scmp.eq.s32.totalorder %s28, 0
      %p196 = por %p194, %p195
      %p197 = scmp.ne.s32.totalorder %s185, %s186
      %p198 = scmp.eq.s32.totalorder %s29, 1
      %p199 = por %p197, %p198
      %p201 = scmp.ne.s32.totalorder %s186, %s200
      %p202 = scmp.eq.s32.totalorder %s29, 0
      %p203 = por %p201, %p202
      %s204 = ssub.s32 %s23, %s30
      %p205 = scmp.eq.s32.totalorder %s204, 0
      %s207 = sadd.s32 %s206, 1
      %s208 = scalar_select %p205, %s206, %s207
      %p211 = pneg %p205
      %p212 = scmp.eq.s32.totalorder %s23, 1
      %p213 = por %p211, %p212
      %p214 = scmp.ne.s32.totalorder %s206, %s209
      %p215 = scmp.eq.s32.totalorder %s23, 0
      %p216 = por %p214, %p215
      %p217 = scmp.ne.s32.totalorder %s206, %s209
      %p218 = scmp.eq.s32.totalorder %s28, 1
      %p219 = por %p217, %p218
      %p220 = scmp.ne.s32.totalorder %s209, %s210
      %p221 = scmp.eq.s32.totalorder %s28, 0
      %p222 = por %p220, %p221
      %p223 = scmp.ne.s32.totalorder %s209, %s210
      %p224 = scmp.eq.s32.totalorder %s29, 1
      %p225 = por %p223, %p224
      %p227 = scmp.ne.s32.totalorder %s210, %s226
      %p228 = scmp.eq.s32.totalorder %s29, 0
      %p229 = por %p227, %p228
      %p230 = scmp.le.s32.totalorder 1, %s23
      %p231 = scmp.lt.s32.totalorder %s23, 3
      %p232 = pnand %p230, %p231
      %p233 = pneg %p232
      // Predicated region
      $region9: #{tpu_custom_call.1} parent=5 // pred_check
        _
      $region10: #{tpu_custom_call.1} parent=5 // pred_check_branch
        %235 = sbr.rel (%p232) target = $region12
      $region11: #{tpu_custom_call.1} parent=5 // pred_region
        %s236 = ssub.s32 %s23, 1
        // Predicated region
        $region13: #{tpu_custom_call.1} parent=11 // pred_check
          %p237 = pneg %p70
        $region14: #{tpu_custom_call.1} parent=11 // pred_check_branch
          %239 = sbr.rel (%p237) target = $region16
        $region15: #{tpu_custom_call.1} parent=11 // pred_region
          %s241 = ssub.s32 512, 512
          %242 = vsyncadd [#allocation13], %s241
          %s243 = sshll.u32 [#allocation12], 4
          %s244 = int_to_ptr.vmem [resolvable:$true] %s243
          %249 = dma.hbm_to_vmem [thread:$0]  %s1, 512, %s244, [#allocation13], 128, 128, 8
        $region16: #{tpu_custom_call.1} parent=11 // pred_fallthru
          _
        // Predicated region
        $region17: #{tpu_custom_call.1} parent=11 // pred_check
          %p250 = pneg %p91
        $region18: #{tpu_custom_call.1} parent=11 // pred_check_branch
          %252 = sbr.rel (%p250) target = $region20
        $region19: #{tpu_custom_call.1} parent=11 // pred_region
          %s254 = ssub.s32 512, 512
          %255 = vsyncadd [#allocation13], %s254
          %s256 = sshll.u32 [#allocation14], 4
          %s257 = int_to_ptr.vmem [resolvable:$true] %s256
          %262 = dma.hbm_to_vmem [thread:$0]  %s2, 512, %s257, [#allocation13], 128, 128, 8
        $region20: #{tpu_custom_call.1} parent=11 // pred_fallthru
          _
        // Predicated region
        $region21: #{tpu_custom_call.1} parent=11 // pred_check
          %p263 = pneg %p112
        $region22: #{tpu_custom_call.1} parent=11 // pred_check_branch
          %265 = sbr.rel (%p263) target = $region24
        $region23: #{tpu_custom_call.1} parent=11 // pred_region
          %s267 = ssub.s32 512, 512
          %268 = vsyncadd [#allocation16], %s267
          %s269 = sshll.u32 [#allocation15], 4
          %s270 = int_to_ptr.vmem [resolvable:$true] %s269
          %275 = dma.hbm_to_vmem [thread:$0]  %s3, 512, %s270, [#allocation16], 128, 128, 8
        $region24: #{tpu_custom_call.1} parent=11 // pred_fallthru
          _
        // Predicated region
        $region25: #{tpu_custom_call.1} parent=11 // pred_check
          %p276 = pneg %p133
        $region26: #{tpu_custom_call.1} parent=11 // pred_check_branch
          %278 = sbr.rel (%p276) target = $region28
        $region27: #{tpu_custom_call.1} parent=11 // pred_region
          %s280 = ssub.s32 512, 512
          %281 = vsyncadd [#allocation16], %s280
          %s282 = sshll.u32 [#allocation17], 4
          %s283 = int_to_ptr.vmem [resolvable:$true] %s282
          %288 = dma.hbm_to_vmem [thread:$0]  %s4, 512, %s283, [#allocation16], 128, 128, 8
        $region28: #{tpu_custom_call.1} parent=11 // pred_fallthru
          _
        // Predicated region
        $region29: #{tpu_custom_call.1} parent=11 // pred_check
          %p289 = pneg %p154
        $region30: #{tpu_custom_call.1} parent=11 // pred_check_branch
          %291 = sbr.rel (%p289) target = $region32
        $region31: #{tpu_custom_call.1} parent=11 // pred_region
          _
        $region32: #{tpu_custom_call.1} parent=11 // pred_fallthru
          _
        // Predicated region
        $region33: #{tpu_custom_call.1} parent=11 // pred_check
          %p292 = pneg %p175
        $region34: #{tpu_custom_call.1} parent=11 // pred_check_branch
          %294 = sbr.rel (%p292) target = $region36
        $region35: #{tpu_custom_call.1} parent=11 // pred_region
          %s296 = ssub.s32 128, 128
          %297 = vsyncadd [#allocation19], %s296
          %s299 = sshll.u32 [#allocation18], 4
          %s300 = int_to_ptr.vmem [resolvable:$true] %s299
          %302 = dma.hbm_to_vmem [thread:$0]  %s6, 128, %s300, [#allocation19]
        $region36: #{tpu_custom_call.1} parent=11 // pred_fallthru
          _
        // Predicated region
        $region37: #{tpu_custom_call.1} parent=11 // pred_check
          %p303 = pneg %p196
        $region38: #{tpu_custom_call.1} parent=11 // pred_check_branch
          %305 = sbr.rel (%p303) target = $region40
        $region39: #{tpu_custom_call.1} parent=11 // pred_region
          %s307 = ssub.s32 1024, 1024
          %308 = vsyncadd [#allocation19], %s307
          %s309 = sshll.u32 [#allocation20], 4
          %s310 = int_to_ptr.vmem [resolvable:$true] %s309
          %315 = dma.hbm_to_vmem [thread:$0]  %s7, 1024, %s310, [#allocation19], 128, 128, 8
        $region40: #{tpu_custom_call.1} parent=11 // pred_fallthru
          _
      $region12: #{tpu_custom_call.1} parent=5 // pred_fallthru
        _
      %p316 = scmp.lt.s32.totalorder %s23, 2
      // Predicated region
      $region41: #{tpu_custom_call.1} parent=5 // pred_check
        %p317 = pneg %p316
      $region42: #{tpu_custom_call.1} parent=5 // pred_check_branch
        %319 = sbr.rel (%p317) target = $region44
      $region43: #{tpu_custom_call.1} parent=5 // pred_region
        // Predicated region
        $region45: #{tpu_custom_call.1} parent=43 // pred_check
          %p320 = pneg %p43
        $region46: #{tpu_custom_call.1} parent=43 // pred_check_branch
          %322 = sbr.rel (%p320) target = $region48
        $region47: #{tpu_custom_call.1} parent=43 // pred_region
          %s323 = sand.u32 %s33, 1
          %s324 = scalar_lea.sflag [#allocation10], %s323
          %s325 = sand.u32 %s33, 1
          %s326 = smul.addr %s325, 8
          %s327 = scalar_lea.vmem [#allocation9], %s326
          %s329 = ssub.s32 128, 128
          %330 = vsyncadd %s324, %s329
          %s331 = smul.addr %s23, 128
          %s332 = scalar_lea.hbm %s0, %s331
          %s334 = sshll.u32 %s327, 4
          %s335 = int_to_ptr.vmem [resolvable:$true] %s334
          %337 = dma.hbm_to_vmem [thread:$0]  %s332, 128, %s335, %s324
        $region48: #{tpu_custom_call.1} parent=43 // pred_fallthru
          _
      $region44: #{tpu_custom_call.1} parent=5 // pred_fallthru
        _
      %p338 = scmp.le.s32.totalorder 1, %s23
      %p339 = scmp.lt.s32.totalorder %s23, 3
      %p340 = pnand %p338, %p339
      %p341 = pneg %p340
      // Predicated region
      $region49: #{tpu_custom_call.1} parent=5 // pred_check
        _
      $region50: #{tpu_custom_call.1} parent=5 // pred_check_branch
        %343 = sbr.rel (%p340) target = $region52
      $region51: #{tpu_custom_call.1} parent=5 // pred_region
        %s344 = ssub.s32 %s23, 1
        %s345 = sand.u32 %s36, 1
        %s346 = scalar_lea.sflag [#allocation10], %s345
        %s347 = sand.u32 %s36, 1
        %s348 = smul.addr %s347, 8
        %s349 = scalar_lea.vmem [#allocation9], %s348
        // Predicated region
        $region53: #{tpu_custom_call.1} parent=51 // pred_check
          %p350 = pneg %p49
        $region54: #{tpu_custom_call.1} parent=51 // pred_check_branch
          %352 = sbr.rel (%p350) target = $region56
        $region55: #{tpu_custom_call.1} parent=51 // pred_region
          %353 = dma.done %s346, 128
        $region56: #{tpu_custom_call.1} parent=51 // pred_fallthru
          _
        // Predicated region
        $region57: #{tpu_custom_call.1} parent=51 // pred_check
          %p354 = pneg %p70
        $region58: #{tpu_custom_call.1} parent=51 // pred_check_branch
          %356 = sbr.rel (%p354) target = $region60
        $region59: #{tpu_custom_call.1} parent=51 // pred_region
          %357 = dma.done [#allocation13], 512
        $region60: #{tpu_custom_call.1} parent=51 // pred_fallthru
          _
        // Predicated region
        $region61: #{tpu_custom_call.1} parent=51 // pred_check
          %p358 = pneg %p91
        $region62: #{tpu_custom_call.1} parent=51 // pred_check_branch
          %360 = sbr.rel (%p358) target = $region64
        $region63: #{tpu_custom_call.1} parent=51 // pred_region
          %361 = dma.done [#allocation13], 512
        $region64: #{tpu_custom_call.1} parent=51 // pred_fallthru
          _
        // Predicated region
        $region65: #{tpu_custom_call.1} parent=51 // pred_check
          %p362 = pneg %p112
        $region66: #{tpu_custom_call.1} parent=51 // pred_check_branch
          %364 = sbr.rel (%p362) target = $region68
        $region67: #{tpu_custom_call.1} parent=51 // pred_region
          %365 = dma.done [#allocation16], 512
        $region68: #{tpu_custom_call.1} parent=51 // pred_fallthru
          _
        // Predicated region
        $region69: #{tpu_custom_call.1} parent=51 // pred_check
          %p366 = pneg %p133
        $region70: #{tpu_custom_call.1} parent=51 // pred_check_branch
          %368 = sbr.rel (%p366) target = $region72
        $region71: #{tpu_custom_call.1} parent=51 // pred_region
          %369 = dma.done [#allocation16], 512
        $region72: #{tpu_custom_call.1} parent=51 // pred_fallthru
          _
        // Predicated region
        $region73: #{tpu_custom_call.1} parent=51 // pred_check
          %p370 = pneg %p175
        $region74: #{tpu_custom_call.1} parent=51 // pred_check_branch
          %372 = sbr.rel (%p370) target = $region76
        $region75: #{tpu_custom_call.1} parent=51 // pred_region
          %373 = dma.done [#allocation19], 128
        $region76: #{tpu_custom_call.1} parent=51 // pred_fallthru
          _
        // Predicated region
        $region77: #{tpu_custom_call.1} parent=51 // pred_check
          %p374 = pneg %p196
        $region78: #{tpu_custom_call.1} parent=51 // pred_check_branch
          %376 = sbr.rel (%p374) target = $region80
        $region79: #{tpu_custom_call.1} parent=51 // pred_region
          %377 = dma.done [#allocation19], 1024
        $region80: #{tpu_custom_call.1} parent=51 // pred_fallthru
          _
        %s378 = sand.u32 %s36, 1
        %s379 = scalar_lea.sflag [#allocation10], %s378
        %s380 = sand.u32 %s36, 1
        %s381 = smul.addr %s380, 8
        %s382 = scalar_lea.vmem [#allocation9], %s381
        %p383 = pneg %p49
        %p384 = pneg %p46
        %p385 = pneg %p70
        %p386 = pneg %p67
        %p387 = pneg %p91
        %p388 = pneg %p88
        %p389 = pneg %p112
        %p390 = pneg %p109
        %p391 = pneg %p133
        %p392 = pneg %p130
        %p393 = pneg %p154
        %p394 = pneg %p151
        %p395 = pneg %p175
        %p396 = pneg %p172
        %p397 = pneg %p196
        %p398 = pneg %p193
        %p399 = pneg %p222
        %p400 = pneg %p219
        %s401 = sand.u32 %s209, 1
        %s402 = scalar_lea.sflag [#allocation11], %s401
        %s403 = sand.u32 %s209, 1
        %s404 = smul.addr %s403, 8
        %s405 = scalar_lea.vmem [#allocation21], %s404
        %v406 = vld [vmem:[%s349] sm:$0xff]
        %v407 = vld [vmem:[#allocation12] sm:$0xff]
        %v408 = vld [vmem:[#allocation12 + $0x8] sm:$0xff]
        %v409 = vld [vmem:[#allocation12 + $0x10] sm:$0xff]
        %v410 = vld [vmem:[#allocation12 + $0x18] sm:$0xff]
        %vm411 = vcmask 261120
        %v413 = vsel %vm411, %v406, 0
        %415 = vmatprep.subr.mxu0 0.0
        %416 = vmatpush1.msra.mxu0 %v407
        %417 = vmatprep.subr.mxu0 0.0
        %418 = vmatpush1.msra.mxu0 %v408
        %419 = vmatprep.subr.mxu0 0.0
        %420 = vmatpush1.msra.mxu0 %v409
        %421 = vmatprep.subr.mxu0 0.0
        %422 = vmatpush1.msra.mxu0 %v410
        %423 = vmatprep.subr.mxu0 0.0
        %424 = vmatpush1.msra.mxu0 0.0
        %425 = vmatprep.subr.mxu0 0.0
        %426 = vmatpush1.msra.mxu0 0.0
        %427 = vmatprep.subr.mxu0 0.0
        %428 = vmatpush1.msra.mxu0 0.0
        %429 = vmatprep.subr.mxu0 0.0
        %430 = vmatpush1.msra.mxu0 0.0
        %431 = vmatprep.subr.mxu0 0.0
        %432 = vmatpush1.msra.mxu0 0.0
        %433 = vmatprep.subr.mxu0 0.0
        %434 = vmatpush1.msra.mxu0 0.0
        %435 = vmatprep.subr.mxu0 0.0
        %436 = vmatpush1.msra.mxu0 0.0
        %437 = vmatprep.subr.mxu0 0.0
        %438 = vmatpush1.msra.mxu0 0.0
        %439 = vmatprep.subr.mxu0 0.0
        %440 = vmatpush1.msra.mxu0 0.0
        %441 = vmatprep.subr.mxu0 0.0
        %442 = vmatpush1.msra.mxu0 0.0
        %443 = vmatprep.subr.mxu0 0.0
        %444 = vmatpush1.msra.mxu0 0.0
        %445 = vmatprep.subr.mxu0 0.0
        %446 = vmatpush1.msra.mxu0 0.0
        %447 = vmatprep.subr.mxu0 0.0
        %448 = vmatpush1.msra.mxu0 0.0
        %449 = vmatprep.subr.mxu0 0.0
        %450 = vmatpush1.msra.mxu0 0.0
        %451 = vmatprep.subr.mxu0 0.0
        %452 = vmatpush1.msra.mxu0 0.0
        %453 = vmatprep.subr.mxu0 0.0
        %454 = vmatpush1.msra.mxu0 0.0
        %455 = vmatprep.subr.mxu0 0.0
        %456 = vmatpush1.msra.mxu0 0.0
        %457 = vmatprep.subr.mxu0 0.0
        %458 = vmatpush1.msra.mxu0 0.0
        %459 = vmatprep.subr.mxu0 0.0
        %460 = vmatpush1.msra.mxu0 0.0
        %461 = vmatprep.subr.mxu0 0.0
        %462 = vmatpush1.msra.mxu0 0.0
        %463 = vmatprep.subr.mxu0 0.0
        %464 = vmatpush1.msra.mxu0 0.0
        %465 = vmatprep.subr.mxu0 0.0
        %466 = vmatpush1.msra.mxu0 0.0
        %467 = vmatprep.subr.mxu0 0.0
        %468 = vmatpush1.msra.mxu0 0.0
        %469 = vmatprep.subr.mxu0 0.0
        %470 = vmatpush1.msra.mxu0 0.0
        %471 = vmatprep.subr.mxu0 0.0
        %472 = vmatpush1.msra.mxu0 0.0
        %473 = vmatprep.subr.mxu0 0.0
        %474 = vmatpush1.msra.mxu0 0.0
        %475 = vmatprep.subr.mxu0 0.0
        %476 = vmatpush1.msra.mxu0 0.0
        %477 = vmatprep.subr.mxu0 0.0
        %478 = vmatpush1.msra.mxu0 0.0
        %479 = vmatprep.mubr.f32.mxu0 0.0
        %480 = vmatmul.mubr.f32.gmra.mrb[0].mxu0 %v413
        %v481 = vpop.f32.mrb[0].mxu0
        %v482 = vadd.f32 0.0, %v481
        %v483 = vpop.f32.mrb[0].mxu0
        %484 = vdwg.mxu0
        %vm485 = vcmask 523264
        %486 = vst.msk [vmem:[#allocation2] sm:$0xff] %vm485, %v482
        %v487 = vld [vmem:[#allocation14] sm:$0xff]
        %v488 = vld [vmem:[#allocation14 + $0x8] sm:$0xff]
        %v489 = vld [vmem:[#allocation14 + $0x10] sm:$0xff]
        %v490 = vld [vmem:[#allocation14 + $0x18] sm:$0xff]
        %491 = vmatprep.subr.mxu0 0.0
        %492 = vmatpush1.msra.mxu0 %v487
        %493 = vmatprep.subr.mxu0 0.0
        %494 = vmatpush1.msra.mxu0 %v488
        %495 = vmatprep.subr.mxu0 0.0
        %496 = vmatpush1.msra.mxu0 %v489
        %497 = vmatprep.subr.mxu0 0.0
        %498 = vmatpush1.msra.mxu0 %v490
        %499 = vmatprep.subr.mxu0 0.0
        %500 = vmatpush1.msra.mxu0 0.0
        %501 = vmatprep.subr.mxu0 0.0
        %502 = vmatpush1.msra.mxu0 0.0
        %503 = vmatprep.subr.mxu0 0.0
        %504 = vmatpush1.msra.mxu0 0.0
        %505 = vmatprep.subr.mxu0 0.0
        %506 = vmatpush1.msra.mxu0 0.0
        %507 = vmatprep.subr.mxu0 0.0
        %508 = vmatpush1.msra.mxu0 0.0
        %509 = vmatprep.subr.mxu0 0.0
        %510 = vmatpush1.msra.mxu0 0.0
        %511 = vmatprep.subr.mxu0 0.0
        %512 = vmatpush1.msra.mxu0 0.0
        %513 = vmatprep.subr.mxu0 0.0
        %514 = vmatpush1.msra.mxu0 0.0
        %515 = vmatprep.subr.mxu0 0.0
        %516 = vmatpush1.msra.mxu0 0.0
        %517 = vmatprep.subr.mxu0 0.0
        %518 = vmatpush1.msra.mxu0 0.0
        %519 = vmatprep.subr.mxu0 0.0
        %520 = vmatpush1.msra.mxu0 0.0
        %521 = vmatprep.subr.mxu0 0.0
        %522 = vmatpush1.msra.mxu0 0.0
        %523 = vmatprep.subr.mxu0 0.0
        %524 = vmatpush1.msra.mxu0 0.0
        %525 = vmatprep.subr.mxu0 0.0
        %526 = vmatpush1.msra.mxu0 0.0
        %527 = vmatprep.subr.mxu0 0.0
        %528 = vmatpush1.msra.mxu0 0.0
        %529 = vmatprep.subr.mxu0 0.0
        %530 = vmatpush1.msra.mxu0 0.0
        %531 = vmatprep.subr.mxu0 0.0
        %532 = vmatpush1.msra.mxu0 0.0
        %533 = vmatprep.subr.mxu0 0.0
        %534 = vmatpush1.msra.mxu0 0.0
        %535 = vmatprep.subr.mxu0 0.0
        %536 = vmatpush1.msra.mxu0 0.0
        %537 = vmatprep.subr.mxu0 0.0
        %538 = vmatpush1.msra.mxu0 0.0
        %539 = vmatprep.subr.mxu0 0.0
        %540 = vmatpush1.msra.mxu0 0.0
        %541 = vmatprep.subr.mxu0 0.0
        %542 = vmatpush1.msra.mxu0 0.0
        %543 = vmatprep.subr.mxu0 0.0
        %544 = vmatpush1.msra.mxu0 0.0
        %545 = vmatprep.subr.mxu0 0.0
        %546 = vmatpush1.msra.mxu0 0.0
        %547 = vmatprep.subr.mxu0 0.0
        %548 = vmatpush1.msra.mxu0 0.0
        %549 = vmatprep.subr.mxu0 0.0
        %550 = vmatpush1.msra.mxu0 0.0
        %551 = vmatprep.subr.mxu0 0.0
        %552 = vmatpush1.msra.mxu0 0.0
        %553 = vmatprep.subr.mxu0 0.0
        %554 = vmatpush1.msra.mxu0 0.0
        %555 = vmatprep.mubr.f32.mxu0 0.0
        %556 = vmatmul.mubr.f32.gmra.mrb[0].mxu0 %v413
        %v557 = vpop.f32.mrb[0].mxu0
        %v558 = vadd.f32 0.0, %v557
        %v559 = vpop.f32.mrb[0].mxu0
        %560 = vdwg.mxu0
        %561 = vst.msk [vmem:[#allocation3] sm:$0xff] %vm485, %v558
        %v562 = vld [vmem:[#allocation15] sm:$0xff]
        %v563 = vld [vmem:[#allocation15 + $0x8] sm:$0xff]
        %v564 = vld [vmem:[#allocation15 + $0x10] sm:$0xff]
        %v565 = vld [vmem:[#allocation15 + $0x18] sm:$0xff]
        %566 = vmatprep.subr.mxu0 0.0
        %567 = vmatpush1.msra.mxu0 %v562
        %568 = vmatprep.subr.mxu0 0.0
        %569 = vmatpush1.msra.mxu0 %v563
        %570 = vmatprep.subr.mxu0 0.0
        %571 = vmatpush1.msra.mxu0 %v564
        %572 = vmatprep.subr.mxu0 0.0
        %573 = vmatpush1.msra.mxu0 %v565
        %574 = vmatprep.subr.mxu0 0.0
        %575 = vmatpush1.msra.mxu0 0.0
        %576 = vmatprep.subr.mxu0 0.0
        %577 = vmatpush1.msra.mxu0 0.0
        %578 = vmatprep.subr.mxu0 0.0
        %579 = vmatpush1.msra.mxu0 0.0
        %580 = vmatprep.subr.mxu0 0.0
        %581 = vmatpush1.msra.mxu0 0.0
        %582 = vmatprep.subr.mxu0 0.0
        %583 = vmatpush1.msra.mxu0 0.0
        %584 = vmatprep.subr.mxu0 0.0
        %585 = vmatpush1.msra.mxu0 0.0
        %586 = vmatprep.subr.mxu0 0.0
        %587 = vmatpush1.msra.mxu0 0.0
        %588 = vmatprep.subr.mxu0 0.0
        %589 = vmatpush1.msra.mxu0 0.0
        %590 = vmatprep.subr.mxu0 0.0
        %591 = vmatpush1.msra.mxu0 0.0
        %592 = vmatprep.subr.mxu0 0.0
        %593 = vmatpush1.msra.mxu0 0.0
        %594 = vmatprep.subr.mxu0 0.0
        %595 = vmatpush1.msra.mxu0 0.0
        %596 = vmatprep.subr.mxu0 0.0
        %597 = vmatpush1.msra.mxu0 0.0
        %598 = vmatprep.subr.mxu0 0.0
        %599 = vmatpush1.msra.mxu0 0.0
        %600 = vmatprep.subr.mxu0 0.0
        %601 = vmatpush1.msra.mxu0 0.0
        %602 = vmatprep.subr.mxu0 0.0
        %603 = vmatpush1.msra.mxu0 0.0
        %604 = vmatprep.subr.mxu0 0.0
        %605 = vmatpush1.msra.mxu0 0.0
        %606 = vmatprep.subr.mxu0 0.0
        %607 = vmatpush1.msra.mxu0 0.0
        %608 = vmatprep.subr.mxu0 0.0
        %609 = vmatpush1.msra.mxu0 0.0
        %610 = vmatprep.subr.mxu0 0.0
        %611 = vmatpush1.msra.mxu0 0.0
        %612 = vmatprep.subr.mxu0 0.0
        %613 = vmatpush1.msra.mxu0 0.0
        %614 = vmatprep.subr.mxu0 0.0
        %615 = vmatpush1.msra.mxu0 0.0
        %616 = vmatprep.subr.mxu0 0.0
        %617 = vmatpush1.msra.mxu0 0.0
        %618 = vmatprep.subr.mxu0 0.0
        %619 = vmatpush1.msra.mxu0 0.0
        %620 = vmatprep.subr.mxu0 0.0
        %621 = vmatpush1.msra.mxu0 0.0
        %622 = vmatprep.subr.mxu0 0.0
        %623 = vmatpush1.msra.mxu0 0.0
        %624 = vmatprep.subr.mxu0 0.0
        %625 = vmatpush1.msra.mxu0 0.0
        %626 = vmatprep.subr.mxu0 0.0
        %627 = vmatpush1.msra.mxu0 0.0
        %628 = vmatprep.subr.mxu0 0.0
        %629 = vmatpush1.msra.mxu0 0.0
        %630 = vmatprep.mubr.f32.mxu0 0.0
        %631 = vmatmul.mubr.f32.gmra.mrb[0].mxu0 %v413
        %v632 = vpop.f32.mrb[0].mxu0
        %v633 = vadd.f32 0.0, %v632
        %v634 = vpop.f32.mrb[0].mxu0
        %635 = vdwg.mxu0
        %636 = vst.msk [vmem:[#allocation4] sm:$0xff] %vm485, %v633
        %v637 = vld [vmem:[#allocation17] sm:$0xff]
        %v638 = vld [vmem:[#allocation17 + $0x8] sm:$0xff]
        %v639 = vld [vmem:[#allocation17 + $0x10] sm:$0xff]
        %v640 = vld [vmem:[#allocation17 + $0x18] sm:$0xff]
        %641 = vmatprep.subr.mxu0 0.0
        %642 = vmatpush1.msra.mxu0 %v637
        %643 = vmatprep.subr.mxu0 0.0
        %644 = vmatpush1.msra.mxu0 %v638
        %645 = vmatprep.subr.mxu0 0.0
        %646 = vmatpush1.msra.mxu0 %v639
        %647 = vmatprep.subr.mxu0 0.0
        %648 = vmatpush1.msra.mxu0 %v640
        %649 = vmatprep.subr.mxu0 0.0
        %650 = vmatpush1.msra.mxu0 0.0
        %651 = vmatprep.subr.mxu0 0.0
        %652 = vmatpush1.msra.mxu0 0.0
        %653 = vmatprep.subr.mxu0 0.0
        %654 = vmatpush1.msra.mxu0 0.0
        %655 = vmatprep.subr.mxu0 0.0
        %656 = vmatpush1.msra.mxu0 0.0
        %657 = vmatprep.subr.mxu0 0.0
        %658 = vmatpush1.msra.mxu0 0.0
        %659 = vmatprep.subr.mxu0 0.0
        %660 = vmatpush1.msra.mxu0 0.0
        %661 = vmatprep.subr.mxu0 0.0
        %662 = vmatpush1.msra.mxu0 0.0
        %663 = vmatprep.subr.mxu0 0.0
        %664 = vmatpush1.msra.mxu0 0.0
        %665 = vmatprep.subr.mxu0 0.0
        %666 = vmatpush1.msra.mxu0 0.0
        %667 = vmatprep.subr.mxu0 0.0
        %668 = vmatpush1.msra.mxu0 0.0
        %669 = vmatprep.subr.mxu0 0.0
        %670 = vmatpush1.msra.mxu0 0.0
        %671 = vmatprep.subr.mxu0 0.0
        %672 = vmatpush1.msra.mxu0 0.0
        %673 = vmatprep.subr.mxu0 0.0
        %674 = vmatpush1.msra.mxu0 0.0
        %675 = vmatprep.subr.mxu0 0.0
        %676 = vmatpush1.msra.mxu0 0.0
        %677 = vmatprep.subr.mxu0 0.0
        %678 = vmatpush1.msra.mxu0 0.0
        %679 = vmatprep.subr.mxu0 0.0
        %680 = vmatpush1.msra.mxu0 0.0
        %681 = vmatprep.subr.mxu0 0.0
        %682 = vmatpush1.msra.mxu0 0.0
        %683 = vmatprep.subr.mxu0 0.0
        %684 = vmatpush1.msra.mxu0 0.0
        %685 = vmatprep.subr.mxu0 0.0
        %686 = vmatpush1.msra.mxu0 0.0
        %687 = vmatprep.subr.mxu0 0.0
        %688 = vmatpush1.msra.mxu0 0.0
        %689 = vmatprep.subr.mxu0 0.0
        %690 = vmatpush1.msra.mxu0 0.0
        %691 = vmatprep.subr.mxu0 0.0
        %692 = vmatpush1.msra.mxu0 0.0
        %693 = vmatprep.subr.mxu0 0.0
        %694 = vmatpush1.msra.mxu0 0.0
        %695 = vmatprep.subr.mxu0 0.0
        %696 = vmatpush1.msra.mxu0 0.0
        %697 = vmatprep.subr.mxu0 0.0
        %698 = vmatpush1.msra.mxu0 0.0
        %699 = vmatprep.subr.mxu0 0.0
        %700 = vmatpush1.msra.mxu0 0.0
        %701 = vmatprep.subr.mxu0 0.0
        %702 = vmatpush1.msra.mxu0 0.0
        %703 = vmatprep.subr.mxu0 0.0
        %704 = vmatpush1.msra.mxu0 0.0
        %705 = vmatprep.mubr.f32.mxu0 0.0
        %706 = vmatmul.mubr.f32.gmra.mrb[0].mxu0 %v413
        %v707 = vpop.f32.mrb[0].mxu0
        %v708 = vadd.f32 0.0, %v707
        %v709 = vpop.f32.mrb[0].mxu0
        %710 = vdwg.mxu0
        %711 = vst.msk [vmem:[#allocation5] sm:$0xff] %vm485, %v708
        %v712 = vld [vmem:[%s5] sm:$0xff]
        %v713 = vld [vmem:[%s5 + $0x8] sm:$0xff]
        %v714 = vld [vmem:[#allocation18] sm:$0xff]
        %v715 = vld [vmem:[#allocation2] sm:$0xff]
        %v716 = vld [vmem:[#allocation3] sm:$0xff]
        %v717 = vld [vmem:[#allocation4] sm:$0xff]
        %v718 = vld [vmem:[#allocation5] sm:$0xff]
        %vm719 = vcmask 130048
        %v721 = vsel %vm719, %v718, 0
        %v724 = vsel %vm719, %v712, 0
        %v727 = vsel %vm719, %v713, 0
        %729 = vmatprep.subr.mxu0 0.0
        %730 = vmatpush1.xpose.msra.mxu0 %v724
        %731 = vmatprep.subr.mxu0 0.0
        %732 = vmatpush1.xpose.msra.mxu0 %v727
        %733 = vmatprep.subr.mxu0 0.0
        %734 = vmatpush1.xpose.msra.mxu0 0.0
        %735 = vmatprep.subr.mxu0 0.0
        %736 = vmatpush1.xpose.msra.mxu0 0.0
        %737 = vmatprep.subr.mxu0 0.0
        %738 = vmatpush1.xpose.msra.mxu0 0.0
        %739 = vmatprep.subr.mxu0 0.0
        %740 = vmatpush1.xpose.msra.mxu0 0.0
        %741 = vmatprep.subr.mxu0 0.0
        %742 = vmatpush1.xpose.msra.mxu0 0.0
        %743 = vmatprep.subr.mxu0 0.0
        %744 = vmatpush1.xpose.msra.mxu0 0.0
        %745 = vmatprep.subr.mxu0 0.0
        %746 = vmatpush1.xpose.msra.mxu0 0.0
        %747 = vmatprep.subr.mxu0 0.0
        %748 = vmatpush1.xpose.msra.mxu0 0.0
        %749 = vmatprep.subr.mxu0 0.0
        %750 = vmatpush1.xpose.msra.mxu0 0.0
        %751 = vmatprep.subr.mxu0 0.0
        %752 = vmatpush1.xpose.msra.mxu0 0.0
        %753 = vmatprep.subr.mxu0 0.0
        %754 = vmatpush1.xpose.msra.mxu0 0.0
        %755 = vmatprep.subr.mxu0 0.0
        %756 = vmatpush1.xpose.msra.mxu0 0.0
        %757 = vmatprep.subr.mxu0 0.0
        %758 = vmatpush1.xpose.msra.mxu0 0.0
        %759 = vmatprep.subr.mxu0 0.0
        %760 = vmatpush1.xpose.msra.mxu0 0.0
        %761 = vmatprep.subr.mxu0 0.0
        %762 = vmatpush1.xpose.msra.mxu0 0.0
        %763 = vmatprep.subr.mxu0 0.0
        %764 = vmatpush1.xpose.msra.mxu0 0.0
        %765 = vmatprep.subr.mxu0 0.0
        %766 = vmatpush1.xpose.msra.mxu0 0.0
        %767 = vmatprep.subr.mxu0 0.0
        %768 = vmatpush1.xpose.msra.mxu0 0.0
        %769 = vmatprep.subr.mxu0 0.0
        %770 = vmatpush1.xpose.msra.mxu0 0.0
        %771 = vmatprep.subr.mxu0 0.0
        %772 = vmatpush1.xpose.msra.mxu0 0.0
        %773 = vmatprep.subr.mxu0 0.0
        %774 = vmatpush1.xpose.msra.mxu0 0.0
        %775 = vmatprep.subr.mxu0 0.0
        %776 = vmatpush1.xpose.msra.mxu0 0.0
        %777 = vmatprep.subr.mxu0 0.0
        %778 = vmatpush1.xpose.msra.mxu0 0.0
        %779 = vmatprep.subr.mxu0 0.0
        %780 = vmatpush1.xpose.msra.mxu0 0.0
        %781 = vmatprep.subr.mxu0 0.0
        %782 = vmatpush1.xpose.msra.mxu0 0.0
        %783 = vmatprep.subr.mxu0 0.0
        %784 = vmatpush1.xpose.msra.mxu0 0.0
        %785 = vmatprep.subr.mxu0 0.0
        %786 = vmatpush1.xpose.msra.mxu0 0.0
        %787 = vmatprep.subr.mxu0 0.0
        %788 = vmatpush1.xpose.msra.mxu0 0.0
        %789 = vmatprep.subr.mxu0 0.0
        %790 = vmatpush1.xpose.msra.mxu0 0.0
        %791 = vmatprep.subr.mxu0 0.0
        %792 = vmatpush1.xpose.msra.mxu0 0.0
        %793 = vmatprep.mubr.f32.mxu0 0.0
        %794 = vmatmul.mubr.f32.gmra.mrb[0].mxu0 %v721
        %v795 = vpop.f32.mrb[0].mxu0
        %v796 = vadd.f32 0.0, %v795
        %v797 = vpop.f32.mrb[0].mxu0
        %798 = vdwg.mxu0
        %v799 = vlaneseq
        %v800 = vshrl.u32 %v799, 7
        %v801 = vsub.s32 7, %v800
        %802 = vst.msk [vmem:[#allocation7] sm:$0xff] %vm719, %v796
        %v803 = vld [vmem:[#allocation7] sm:$0xff]
        %805 = vrot.lane.b32.xlu0 %v803, 127
        %v806 = vpop.permute.xlu0 %805
        %vm808 = vcmask 121856
        %809 = vst.msk [vmem:[#allocation8] sm:$0xff] %vm808, %v806
        %vm810 = vcmask 130168
        %811 = vst.msk [vmem:[#allocation8] sm:$0xff] %vm810, 0.0
        %v812 = vand.u32 %v801, 1
        %vm813 = vcmp.ne.s32.totalorder %v812, 0
        %v814 = vld [vmem:[#allocation8] sm:$0xff]
        %v815 = vsel %vm813, 1, 0
        %vm816 = vcmp.eq.s32.totalorder %v815, 1
        %v817 = vsel %vm816, %v814, %v796
        %818 = vst.msk [vmem:[#allocation7] sm:$0xff] %vm719, %v817
        %v819 = vld [vmem:[#allocation7] sm:$0xff]
        %821 = vrot.lane.b32.xlu0 %v819, 126
        %v822 = vpop.permute.xlu0 %821
        %vm824 = vcmask 113664
        %825 = vst.msk [vmem:[#allocation8] sm:$0xff] %vm824, %v822
        %vm826 = vcmask 130160
        %827 = vst.msk [vmem:[#allocation8] sm:$0xff] %vm826, 0.0
        %v828 = vand.u32 %v801, 2
        %vm829 = vcmp.ne.s32.totalorder %v828, 0
        %v830 = vld [vmem:[#allocation8] sm:$0xff]
        %v831 = vsel %vm829, 1, 0
        %vm832 = vcmp.eq.s32.totalorder %v831, 1
        %v833 = vsel %vm832, %v830, %v817
        %834 = vst.msk [vmem:[#allocation7] sm:$0xff] %vm719, %v833
        %v835 = vld [vmem:[#allocation7] sm:$0xff]
        %837 = vrot.lane.b32.xlu0 %v835, 124
        %v838 = vpop.permute.xlu0 %837
        %vm840 = vcmask 97280
        %841 = vst.msk [vmem:[#allocation8] sm:$0xff] %vm840, %v838
        %vm842 = vcmask 130144
        %843 = vst.msk [vmem:[#allocation8] sm:$0xff] %vm842, 0.0
        %v844 = vand.u32 %v801, 4
        %vm845 = vcmp.ne.s32.totalorder %v844, 0
        %v846 = vld [vmem:[#allocation8] sm:$0xff]
        %v847 = vsel %vm845, 1, 0
        %vm848 = vcmp.eq.s32.totalorder %v847, 1
        %v849 = vsel %vm848, %v846, %v833
        %v851 = vsel %vm719, %v715, 0
        %v854 = vsel %vm719, %v716, 0
        %856 = vmatprep.subr.mxu0 0.0
        %857 = vmatpush1.xpose.msra.mxu0 %v854
        %858 = vmatprep.subr.mxu0 0.0
        %859 = vmatpush1.xpose.msra.mxu0 0.0
        %860 = vmatprep.subr.mxu0 0.0
        %861 = vmatpush1.xpose.msra.mxu0 0.0
        %862 = vmatprep.subr.mxu0 0.0
        %863 = vmatpush1.xpose.msra.mxu0 0.0
        %864 = vmatprep.subr.mxu0 0.0
        %865 = vmatpush1.xpose.msra.mxu0 0.0
        %866 = vmatprep.subr.mxu0 0.0
        %867 = vmatpush1.xpose.msra.mxu0 0.0
        %868 = vmatprep.subr.mxu0 0.0
        %869 = vmatpush1.xpose.msra.mxu0 0.0
        %870 = vmatprep.subr.mxu0 0.0
        %871 = vmatpush1.xpose.msra.mxu0 0.0
        %872 = vmatprep.subr.mxu0 0.0
        %873 = vmatpush1.xpose.msra.mxu0 0.0
        %874 = vmatprep.subr.mxu0 0.0
        %875 = vmatpush1.xpose.msra.mxu0 0.0
        %876 = vmatprep.subr.mxu0 0.0
        %877 = vmatpush1.xpose.msra.mxu0 0.0
        %878 = vmatprep.subr.mxu0 0.0
        %879 = vmatpush1.xpose.msra.mxu0 0.0
        %880 = vmatprep.subr.mxu0 0.0
        %881 = vmatpush1.xpose.msra.mxu0 0.0
        %882 = vmatprep.subr.mxu0 0.0
        %883 = vmatpush1.xpose.msra.mxu0 0.0
        %884 = vmatprep.subr.mxu0 0.0
        %885 = vmatpush1.xpose.msra.mxu0 0.0
        %886 = vmatprep.subr.mxu0 0.0
        %887 = vmatpush1.xpose.msra.mxu0 0.0
        %888 = vmatprep.subr.mxu0 0.0
        %889 = vmatpush1.xpose.msra.mxu0 0.0
        %890 = vmatprep.subr.mxu0 0.0
        %891 = vmatpush1.xpose.msra.mxu0 0.0
        %892 = vmatprep.subr.mxu0 0.0
        %893 = vmatpush1.xpose.msra.mxu0 0.0
        %894 = vmatprep.subr.mxu0 0.0
        %895 = vmatpush1.xpose.msra.mxu0 0.0
        %896 = vmatprep.subr.mxu0 0.0
        %897 = vmatpush1.xpose.msra.mxu0 0.0
        %898 = vmatprep.subr.mxu0 0.0
        %899 = vmatpush1.xpose.msra.mxu0 0.0
        %900 = vmatprep.subr.mxu0 0.0
        %901 = vmatpush1.xpose.msra.mxu0 0.0
        %902 = vmatprep.subr.mxu0 0.0
        %903 = vmatpush1.xpose.msra.mxu0 0.0
        %904 = vmatprep.subr.mxu0 0.0
        %905 = vmatpush1.xpose.msra.mxu0 0.0
        %906 = vmatprep.subr.mxu0 0.0
        %907 = vmatpush1.xpose.msra.mxu0 0.0
        %908 = vmatprep.subr.mxu0 0.0
        %909 = vmatpush1.xpose.msra.mxu0 0.0
        %910 = vmatprep.subr.mxu0 0.0
        %911 = vmatpush1.xpose.msra.mxu0 0.0
        %912 = vmatprep.subr.mxu0 0.0
        %913 = vmatpush1.xpose.msra.mxu0 0.0
        %914 = vmatprep.subr.mxu0 0.0
        %915 = vmatpush1.xpose.msra.mxu0 0.0
        %916 = vmatprep.subr.mxu0 0.0
        %917 = vmatpush1.xpose.msra.mxu0 0.0
        %918 = vmatprep.subr.mxu0 0.0
        %919 = vmatpush1.xpose.msra.mxu0 0.0
        %920 = vmatprep.mubr.f32.mxu0 0.0
        %921 = vmatmul.mubr.f32.gmra.mrb[0].mxu0 %v851
        %v922 = vpop.f32.mrb[0].mxu0
        %v923 = vadd.f32 %v849, %v922
        %v924 = vpop.f32.mrb[0].mxu0
        %925 = vdwg.mxu0
        %v926 = vmul.f32 %v923, 0.25
        %vm927 = vcmask 64512
        %v928 = vsel %vm927, %v926, -inf
        %929 = vmax.xlane.f32.xlu0 %v928
        %v930 = vpop.xlane.xlu0 %929
        %v931 = vsub.f32 %v926, %v930
        %v932 = vmul.f32 %v931, 1.442695
        %v933 = vpow.pop %v932
        %v934 = vsel %vm927, %v933, 0.0
        %935 = vadd.xlane.f32.xlu0 %v934
        %v936 = vpop.xlane.xlu0 %935
        %v937 = vrcp.pop %v936
        %v938 = vmul.f32 %v933, %v937
        %v939 = vmul.f32 %v938, %v714
        %v941 = vsel %vm927, %v939, 0
        %943 = vmatprep.subr.mxu0 0.0
        %944 = vmatpush1.msra.mxu0 %v717
        %945 = vmatprep.subr.mxu0 0.0
        %946 = vmatpush1.msra.mxu0 0.0
        %947 = vmatprep.subr.mxu0 0.0
        %948 = vmatpush1.msra.mxu0 0.0
        %949 = vmatprep.subr.mxu0 0.0
        %950 = vmatpush1.msra.mxu0 0.0
        %951 = vmatprep.subr.mxu0 0.0
        %952 = vmatpush1.msra.mxu0 0.0
        %953 = vmatprep.subr.mxu0 0.0
        %954 = vmatpush1.msra.mxu0 0.0
        %955 = vmatprep.subr.mxu0 0.0
        %956 = vmatpush1.msra.mxu0 0.0
        %957 = vmatprep.subr.mxu0 0.0
        %958 = vmatpush1.msra.mxu0 0.0
        %959 = vmatprep.subr.mxu0 0.0
        %960 = vmatpush1.msra.mxu0 0.0
        %961 = vmatprep.subr.mxu0 0.0
        %962 = vmatpush1.msra.mxu0 0.0
        %963 = vmatprep.subr.mxu0 0.0
        %964 = vmatpush1.msra.mxu0 0.0
        %965 = vmatprep.subr.mxu0 0.0
        %966 = vmatpush1.msra.mxu0 0.0
        %967 = vmatprep.subr.mxu0 0.0
        %968 = vmatpush1.msra.mxu0 0.0
        %969 = vmatprep.subr.mxu0 0.0
        %970 = vmatpush1.msra.mxu0 0.0
        %971 = vmatprep.subr.mxu0 0.0
        %972 = vmatpush1.msra.mxu0 0.0
        %973 = vmatprep.subr.mxu0 0.0
        %974 = vmatpush1.msra.mxu0 0.0
        %975 = vmatprep.subr.mxu0 0.0
        %976 = vmatpush1.msra.mxu0 0.0
        %977 = vmatprep.subr.mxu0 0.0
        %978 = vmatpush1.msra.mxu0 0.0
        %979 = vmatprep.subr.mxu0 0.0
        %980 = vmatpush1.msra.mxu0 0.0
        %981 = vmatprep.subr.mxu0 0.0
        %982 = vmatpush1.msra.mxu0 0.0
        %983 = vmatprep.subr.mxu0 0.0
        %984 = vmatpush1.msra.mxu0 0.0
        %985 = vmatprep.subr.mxu0 0.0
        %986 = vmatpush1.msra.mxu0 0.0
        %987 = vmatprep.subr.mxu0 0.0
        %988 = vmatpush1.msra.mxu0 0.0
        %989 = vmatprep.subr.mxu0 0.0
        %990 = vmatpush1.msra.mxu0 0.0
        %991 = vmatprep.subr.mxu0 0.0
        %992 = vmatpush1.msra.mxu0 0.0
        %993 = vmatprep.subr.mxu0 0.0
        %994 = vmatpush1.msra.mxu0 0.0
        %995 = vmatprep.subr.mxu0 0.0
        %996 = vmatpush1.msra.mxu0 0.0
        %997 = vmatprep.subr.mxu0 0.0
        %998 = vmatpush1.msra.mxu0 0.0
        %999 = vmatprep.subr.mxu0 0.0
        %1000 = vmatpush1.msra.mxu0 0.0
        %1001 = vmatprep.subr.mxu0 0.0
        %1002 = vmatpush1.msra.mxu0 0.0
        %1003 = vmatprep.subr.mxu0 0.0
        %1004 = vmatpush1.msra.mxu0 0.0
        %1005 = vmatprep.subr.mxu0 0.0
        %1006 = vmatpush1.msra.mxu0 0.0
        %1007 = vmatprep.mubr.f32.mxu0 0.0
        %1008 = vmatmul.mubr.f32.gmra.mrb[0].mxu0 %v941
        %v1009 = vpop.f32.mrb[0].mxu0
        %v1010 = vadd.f32 0.0, %v1009
        %v1011 = vpop.f32.mrb[0].mxu0
        %1012 = vdwg.mxu0
        %1013 = vst.msk [vmem:[#allocation6] sm:$0xff] %vm719, %v1010
        %v1014 = vld [vmem:[#allocation2] sm:$0xff]
        %v1015 = vld [vmem:[#allocation3] sm:$0xff]
        %v1016 = vld [vmem:[#allocation4] sm:$0xff]
        %v1017 = vld [vmem:[#allocation5] sm:$0xff]
        %1019 = vrot.lane.b32.xlu0 %v1017, 112
        %v1020 = vpop.permute.xlu0 %1019
        %v1021 = vsel %vm719, %v1020, 0
        %1023 = vmatprep.subr.mxu0 0.0
        %1024 = vmatpush1.xpose.msra.mxu0 %v724
        %1025 = vmatprep.subr.mxu0 0.0
        %1026 = vmatpush1.xpose.msra.mxu0 %v727
        %1027 = vmatprep.subr.mxu0 0.0
        %1028 = vmatpush1.xpose.msra.mxu0 0.0
        %1029 = vmatprep.subr.mxu0 0.0
        %1030 = vmatpush1.xpose.msra.mxu0 0.0
        %1031 = vmatprep.subr.mxu0 0.0
        %1032 = vmatpush1.xpose.msra.mxu0 0.0
        %1033 = vmatprep.subr.mxu0 0.0
        %1034 = vmatpush1.xpose.msra.mxu0 0.0
        %1035 = vmatprep.subr.mxu0 0.0
        %1036 = vmatpush1.xpose.msra.mxu0 0.0
        %1037 = vmatprep.subr.mxu0 0.0
        %1038 = vmatpush1.xpose.msra.mxu0 0.0
        %1039 = vmatprep.subr.mxu0 0.0
        %1040 = vmatpush1.xpose.msra.mxu0 0.0
        %1041 = vmatprep.subr.mxu0 0.0
        %1042 = vmatpush1.xpose.msra.mxu0 0.0
        %1043 = vmatprep.subr.mxu0 0.0
        %1044 = vmatpush1.xpose.msra.mxu0 0.0
        %1045 = vmatprep.subr.mxu0 0.0
        %1046 = vmatpush1.xpose.msra.mxu0 0.0
        %1047 = vmatprep.subr.mxu0 0.0
        %1048 = vmatpush1.xpose.msra.mxu0 0.0
        %1049 = vmatprep.subr.mxu0 0.0
        %1050 = vmatpush1.xpose.msra.mxu0 0.0
        %1051 = vmatprep.subr.mxu0 0.0
        %1052 = vmatpush1.xpose.msra.mxu0 0.0
        %1053 = vmatprep.subr.mxu0 0.0
        %1054 = vmatpush1.xpose.msra.mxu0 0.0
        %1055 = vmatprep.subr.mxu0 0.0
        %1056 = vmatpush1.xpose.msra.mxu0 0.0
        %1057 = vmatprep.subr.mxu0 0.0
        %1058 = vmatpush1.xpose.msra.mxu0 0.0
        %1059 = vmatprep.subr.mxu0 0.0
        %1060 = vmatpush1.xpose.msra.mxu0 0.0
        %1061 = vmatprep.subr.mxu0 0.0
        %1062 = vmatpush1.xpose.msra.mxu0 0.0
        %1063 = vmatprep.subr.mxu0 0.0
        %1064 = vmatpush1.xpose.msra.mxu0 0.0
        %1065 = vmatprep.subr.mxu0 0.0
        %1066 = vmatpush1.xpose.msra.mxu0 0.0
        %1067 = vmatprep.subr.mxu0 0.0
        %1068 = vmatpush1.xpose.msra.mxu0 0.0
        %1069 = vmatprep.subr.mxu0 0.0
        %1070 = vmatpush1.xpose.msra.mxu0 0.0
        %1071 = vmatprep.subr.mxu0 0.0
        %1072 = vmatpush1.xpose.msra.mxu0 0.0
        %1073 = vmatprep.subr.mxu0 0.0
        %1074 = vmatpush1.xpose.msra.mxu0 0.0
        %1075 = vmatprep.subr.mxu0 0.0
        %1076 = vmatpush1.xpose.msra.mxu0 0.0
        %1077 = vmatprep.subr.mxu0 0.0
        %1078 = vmatpush1.xpose.msra.mxu0 0.0
        %1079 = vmatprep.subr.mxu0 0.0
        %1080 = vmatpush1.xpose.msra.mxu0 0.0
        %1081 = vmatprep.subr.mxu0 0.0
        %1082 = vmatpush1.xpose.msra.mxu0 0.0
        %1083 = vmatprep.subr.mxu0 0.0
        %1084 = vmatpush1.xpose.msra.mxu0 0.0
        %1085 = vmatprep.subr.mxu0 0.0
        %1086 = vmatpush1.xpose.msra.mxu0 0.0
        %1087 = vmatprep.mubr.f32.mxu0 0.0
        %1088 = vmatmul.mubr.f32.gmra.mrb[0].mxu0 %v1021
        %v1089 = vpop.f32.mrb[0].mxu0
        %v1090 = vadd.f32 0.0, %v1089
        %v1091 = vpop.f32.mrb[0].mxu0
        %1092 = vdwg.mxu0
        %1093 = vst.msk [vmem:[#allocation7] sm:$0xff] %vm719, %v1090
        %v1094 = vld [vmem:[#allocation7] sm:$0xff]
        %1096 = vrot.lane.b32.xlu0 %v1094, 127
        %v1097 = vpop.permute.xlu0 %1096
        %1099 = vst.msk [vmem:[#allocation8] sm:$0xff] %vm808, %v1097
        %1100 = vst.msk [vmem:[#allocation8] sm:$0xff] %vm810, 0.0
        %v1101 = vld [vmem:[#allocation8] sm:$0xff]
        %v1102 = vsel %vm816, %v1101, %v1090
        %1103 = vst.msk [vmem:[#allocation7] sm:$0xff] %vm719, %v1102
        %v1104 = vld [vmem:[#allocation7] sm:$0xff]
        %1106 = vrot.lane.b32.xlu0 %v1104, 126
        %v1107 = vpop.permute.xlu0 %1106
        %1109 = vst.msk [vmem:[#allocation8] sm:$0xff] %vm824, %v1107
        %1110 = vst.msk [vmem:[#allocation8] sm:$0xff] %vm826, 0.0
        %v1111 = vld [vmem:[#allocation8] sm:$0xff]
        %v1112 = vsel %vm832, %v1111, %v1102
        %1113 = vst.msk [vmem:[#allocation7] sm:$0xff] %vm719, %v1112
        %v1114 = vld [vmem:[#allocation7] sm:$0xff]
        %1116 = vrot.lane.b32.xlu0 %v1114, 124
        %v1117 = vpop.permute.xlu0 %1116
        %1119 = vst.msk [vmem:[#allocation8] sm:$0xff] %vm840, %v1117
        %1120 = vst.msk [vmem:[#allocation8] sm:$0xff] %vm842, 0.0
        %v1121 = vld [vmem:[#allocation8] sm:$0xff]
        %v1122 = vsel %vm848, %v1121, %v1112
        %1124 = vrot.lane.b32.xlu0 %v1014, 112
        %v1125 = vpop.permute.xlu0 %1124
        %1127 = vrot.lane.b32.xlu0 %v1015, 112
        %v1128 = vpop.permute.xlu0 %1127
        %v1129 = vsel %vm719, %v1125, 0
        %v1131 = vsel %vm719, %v1128, 0
        %1133 = vmatprep.subr.mxu0 0.0
        %1134 = vmatpush1.xpose.msra.mxu0 %v1131
        %1135 = vmatprep.subr.mxu0 0.0
        %1136 = vmatpush1.xpose.msra.mxu0 0.0
        %1137 = vmatprep.subr.mxu0 0.0
        %1138 = vmatpush1.xpose.msra.mxu0 0.0
        %1139 = vmatprep.subr.mxu0 0.0
        %1140 = vmatpush1.xpose.msra.mxu0 0.0
        %1141 = vmatprep.subr.mxu0 0.0
        %1142 = vmatpush1.xpose.msra.mxu0 0.0
        %1143 = vmatprep.subr.mxu0 0.0
        %1144 = vmatpush1.xpose.msra.mxu0 0.0
        %1145 = vmatprep.subr.mxu0 0.0
        %1146 = vmatpush1.xpose.msra.mxu0 0.0
        %1147 = vmatprep.subr.mxu0 0.0
        %1148 = vmatpush1.xpose.msra.mxu0 0.0
        %1149 = vmatprep.subr.mxu0 0.0
        %1150 = vmatpush1.xpose.msra.mxu0 0.0
        %1151 = vmatprep.subr.mxu0 0.0
        %1152 = vmatpush1.xpose.msra.mxu0 0.0
        %1153 = vmatprep.subr.mxu0 0.0
        %1154 = vmatpush1.xpose.msra.mxu0 0.0
        %1155 = vmatprep.subr.mxu0 0.0
        %1156 = vmatpush1.xpose.msra.mxu0 0.0
        %1157 = vmatprep.subr.mxu0 0.0
        %1158 = vmatpush1.xpose.msra.mxu0 0.0
        %1159 = vmatprep.subr.mxu0 0.0
        %1160 = vmatpush1.xpose.msra.mxu0 0.0
        %1161 = vmatprep.subr.mxu0 0.0
        %1162 = vmatpush1.xpose.msra.mxu0 0.0
        %1163 = vmatprep.subr.mxu0 0.0
        %1164 = vmatpush1.xpose.msra.mxu0 0.0
        %1165 = vmatprep.subr.mxu0 0.0
        %1166 = vmatpush1.xpose.msra.mxu0 0.0
        %1167 = vmatprep.subr.mxu0 0.0
        %1168 = vmatpush1.xpose.msra.mxu0 0.0
        %1169 = vmatprep.subr.mxu0 0.0
        %1170 = vmatpush1.xpose.msra.mxu0 0.0
        %1171 = vmatprep.subr.mxu0 0.0
        %1172 = vmatpush1.xpose.msra.mxu0 0.0
        %1173 = vmatprep.subr.mxu0 0.0
        %1174 = vmatpush1.xpose.msra.mxu0 0.0
        %1175 = vmatprep.subr.mxu0 0.0
        %1176 = vmatpush1.xpose.msra.mxu0 0.0
        %1177 = vmatprep.subr.mxu0 0.0
        %1178 = vmatpush1.xpose.msra.mxu0 0.0
        %1179 = vmatprep.subr.mxu0 0.0
        %1180 = vmatpush1.xpose.msra.mxu0 0.0
        %1181 = vmatprep.subr.mxu0 0.0
        %1182 = vmatpush1.xpose.msra.mxu0 0.0
        %1183 = vmatprep.subr.mxu0 0.0
        %1184 = vmatpush1.xpose.msra.mxu0 0.0
        %1185 = vmatprep.subr.mxu0 0.0
        %1186 = vmatpush1.xpose.msra.mxu0 0.0
        %1187 = vmatprep.subr.mxu0 0.0
        %1188 = vmatpush1.xpose.msra.mxu0 0.0
        %1189 = vmatprep.subr.mxu0 0.0
        %1190 = vmatpush1.xpose.msra.mxu0 0.0
        %1191 = vmatprep.subr.mxu0 0.0
        %1192 = vmatpush1.xpose.msra.mxu0 0.0
        %1193 = vmatprep.subr.mxu0 0.0
        %1194 = vmatpush1.xpose.msra.mxu0 0.0
        %1195 = vmatprep.subr.mxu0 0.0
        %1196 = vmatpush1.xpose.msra.mxu0 0.0
        %1197 = vmatprep.mubr.f32.mxu0 0.0
        %1198 = vmatmul.mubr.f32.gmra.mrb[0].mxu0 %v1129
        %v1199 = vpop.f32.mrb[0].mxu0
        %v1200 = vadd.f32 %v1122, %v1199
        %v1201 = vpop.f32.mrb[0].mxu0
        %1202 = vdwg.mxu0
        %v1203 = vmul.f32 %v1200, 0.25
        %v1204 = vsel %vm927, %v1203, -inf
        %1205 = vmax.xlane.f32.xlu0 %v1204
        %v1206 = vpop.xlane.xlu0 %1205
        %v1207 = vsub.f32 %v1203, %v1206
        %v1208 = vmul.f32 %v1207, 1.442695
        %v1209 = vpow.pop %v1208
        %v1210 = vsel %vm927, %v1209, 0.0
        %1211 = vadd.xlane.f32.xlu0 %v1210
        %v1212 = vpop.xlane.xlu0 %1211
        %v1213 = vrcp.pop %v1212
        %v1214 = vmul.f32 %v1209, %v1213
        %v1215 = vmul.f32 %v1214, %v714
        %1217 = vrot.lane.b32.xlu0 %v1016, 112
        %v1218 = vpop.permute.xlu0 %1217
        %v1221 = vsel %vm927, %v1215, 0
        %1223 = vmatprep.subr.mxu0 0.0
        %1224 = vmatpush1.msra.mxu0 %v1218
        %1225 = vmatprep.subr.mxu0 0.0
        %1226 = vmatpush1.msra.mxu0 0.0
        %1227 = vmatprep.subr.mxu0 0.0
        %1228 = vmatpush1.msra.mxu0 0.0
        %1229 = vmatprep.subr.mxu0 0.0
        %1230 = vmatpush1.msra.mxu0 0.0
        %1231 = vmatprep.subr.mxu0 0.0
        %1232 = vmatpush1.msra.mxu0 0.0
        %1233 = vmatprep.subr.mxu0 0.0
        %1234 = vmatpush1.msra.mxu0 0.0
        %1235 = vmatprep.subr.mxu0 0.0
        %1236 = vmatpush1.msra.mxu0 0.0
        %1237 = vmatprep.subr.mxu0 0.0
        %1238 = vmatpush1.msra.mxu0 0.0
        %1239 = vmatprep.subr.mxu0 0.0
        %1240 = vmatpush1.msra.mxu0 0.0
        %1241 = vmatprep.subr.mxu0 0.0
        %1242 = vmatpush1.msra.mxu0 0.0
        %1243 = vmatprep.subr.mxu0 0.0
        %1244 = vmatpush1.msra.mxu0 0.0
        %1245 = vmatprep.subr.mxu0 0.0
        %1246 = vmatpush1.msra.mxu0 0.0
        %1247 = vmatprep.subr.mxu0 0.0
        %1248 = vmatpush1.msra.mxu0 0.0
        %1249 = vmatprep.subr.mxu0 0.0
        %1250 = vmatpush1.msra.mxu0 0.0
        %1251 = vmatprep.subr.mxu0 0.0
        %1252 = vmatpush1.msra.mxu0 0.0
        %1253 = vmatprep.subr.mxu0 0.0
        %1254 = vmatpush1.msra.mxu0 0.0
        %1255 = vmatprep.subr.mxu0 0.0
        %1256 = vmatpush1.msra.mxu0 0.0
        %1257 = vmatprep.subr.mxu0 0.0
        %1258 = vmatpush1.msra.mxu0 0.0
        %1259 = vmatprep.subr.mxu0 0.0
        %1260 = vmatpush1.msra.mxu0 0.0
        %1261 = vmatprep.subr.mxu0 0.0
        %1262 = vmatpush1.msra.mxu0 0.0
        %1263 = vmatprep.subr.mxu0 0.0
        %1264 = vmatpush1.msra.mxu0 0.0
        %1265 = vmatprep.subr.mxu0 0.0
        %1266 = vmatpush1.msra.mxu0 0.0
        %1267 = vmatprep.subr.mxu0 0.0
        %1268 = vmatpush1.msra.mxu0 0.0
        %1269 = vmatprep.subr.mxu0 0.0
        %1270 = vmatpush1.msra.mxu0 0.0
        %1271 = vmatprep.subr.mxu0 0.0
        %1272 = vmatpush1.msra.mxu0 0.0
        %1273 = vmatprep.subr.mxu0 0.0
        %1274 = vmatpush1.msra.mxu0 0.0
        %1275 = vmatprep.subr.mxu0 0.0
        %1276 = vmatpush1.msra.mxu0 0.0
        %1277 = vmatprep.subr.mxu0 0.0
        %1278 = vmatpush1.msra.mxu0 0.0
        %1279 = vmatprep.subr.mxu0 0.0
        %1280 = vmatpush1.msra.mxu0 0.0
        %1281 = vmatprep.subr.mxu0 0.0
        %1282 = vmatpush1.msra.mxu0 0.0
        %1283 = vmatprep.subr.mxu0 0.0
        %1284 = vmatpush1.msra.mxu0 0.0
        %1285 = vmatprep.subr.mxu0 0.0
        %1286 = vmatpush1.msra.mxu0 0.0
        %1287 = vmatprep.mubr.f32.mxu0 0.0
        %1288 = vmatmul.mubr.f32.gmra.mrb[0].mxu0 %v1221
        %v1289 = vpop.f32.mrb[0].mxu0
        %v1290 = vadd.f32 0.0, %v1289
        %v1291 = vpop.f32.mrb[0].mxu0
        %1292 = vdwg.mxu0
        %1294 = vrot.lane.b32.xlu0 %v1290, 16
        %v1295 = vpop.permute.xlu0 %1294
        %vm1297 = vcmask 261248
        %1298 = vst.msk [vmem:[#allocation6] sm:$0xff] %vm1297, %v1295
        %v1299 = vld [vmem:[#allocation2] sm:$0xff]
        %v1300 = vld [vmem:[#allocation3] sm:$0xff]
        %v1301 = vld [vmem:[#allocation4] sm:$0xff]
        %v1302 = vld [vmem:[#allocation5] sm:$0xff]
        %1304 = vrot.lane.b32.xlu0 %v1302, 96
        %v1305 = vpop.permute.xlu0 %1304
        %v1306 = vsel %vm719, %v1305, 0
        %1308 = vmatprep.subr.mxu0 0.0
        %1309 = vmatpush1.xpose.msra.mxu0 %v724
        %1310 = vmatprep.subr.mxu0 0.0
        %1311 = vmatpush1.xpose.msra.mxu0 %v727
        %1312 = vmatprep.subr.mxu0 0.0
        %1313 = vmatpush1.xpose.msra.mxu0 0.0
        %1314 = vmatprep.subr.mxu0 0.0
        %1315 = vmatpush1.xpose.msra.mxu0 0.0
        %1316 = vmatprep.subr.mxu0 0.0
        %1317 = vmatpush1.xpose.msra.mxu0 0.0
        %1318 = vmatprep.subr.mxu0 0.0
        %1319 = vmatpush1.xpose.msra.mxu0 0.0
        %1320 = vmatprep.subr.mxu0 0.0
        %1321 = vmatpush1.xpose.msra.mxu0 0.0
        %1322 = vmatprep.subr.mxu0 0.0
        %1323 = vmatpush1.xpose.msra.mxu0 0.0
        %1324 = vmatprep.subr.mxu0 0.0
        %1325 = vmatpush1.xpose.msra.mxu0 0.0
        %1326 = vmatprep.subr.mxu0 0.0
        %1327 = vmatpush1.xpose.msra.mxu0 0.0
        %1328 = vmatprep.subr.mxu0 0.0
        %1329 = vmatpush1.xpose.msra.mxu0 0.0
        %1330 = vmatprep.subr.mxu0 0.0
        %1331 = vmatpush1.xpose.msra.mxu0 0.0
        %1332 = vmatprep.subr.mxu0 0.0
        %1333 = vmatpush1.xpose.msra.mxu0 0.0
        %1334 = vmatprep.subr.mxu0 0.0
        %1335 = vmatpush1.xpose.msra.mxu0 0.0
        %1336 = vmatprep.subr.mxu0 0.0
        %1337 = vmatpush1.xpose.msra.mxu0 0.0
        %1338 = vmatprep.subr.mxu0 0.0
        %1339 = vmatpush1.xpose.msra.mxu0 0.0
        %1340 = vmatprep.subr.mxu0 0.0
        %1341 = vmatpush1.xpose.msra.mxu0 0.0
        %1342 = vmatprep.subr.mxu0 0.0
        %1343 = vmatpush1.xpose.msra.mxu0 0.0
        %1344 = vmatprep.subr.mxu0 0.0
        %1345 = vmatpush1.xpose.msra.mxu0 0.0
        %1346 = vmatprep.subr.mxu0 0.0
        %1347 = vmatpush1.xpose.msra.mxu0 0.0
        %1348 = vmatprep.subr.mxu0 0.0
        %1349 = vmatpush1.xpose.msra.mxu0 0.0
        %1350 = vmatprep.subr.mxu0 0.0
        %1351 = vmatpush1.xpose.msra.mxu0 0.0
        %1352 = vmatprep.subr.mxu0 0.0
        %1353 = vmatpush1.xpose.msra.mxu0 0.0
        %1354 = vmatprep.subr.mxu0 0.0
        %1355 = vmatpush1.xpose.msra.mxu0 0.0
        %1356 = vmatprep.subr.mxu0 0.0
        %1357 = vmatpush1.xpose.msra.mxu0 0.0
        %1358 = vmatprep.subr.mxu0 0.0
        %1359 = vmatpush1.xpose.msra.mxu0 0.0
        %1360 = vmatprep.subr.mxu0 0.0
        %1361 = vmatpush1.xpose.msra.mxu0 0.0
        %1362 = vmatprep.subr.mxu0 0.0
        %1363 = vmatpush1.xpose.msra.mxu0 0.0
        %1364 = vmatprep.subr.mxu0 0.0
        %1365 = vmatpush1.xpose.msra.mxu0 0.0
        %1366 = vmatprep.subr.mxu0 0.0
        %1367 = vmatpush1.xpose.msra.mxu0 0.0
        %1368 = vmatprep.subr.mxu0 0.0
        %1369 = vmatpush1.xpose.msra.mxu0 0.0
        %1370 = vmatprep.subr.mxu0 0.0
        %1371 = vmatpush1.xpose.msra.mxu0 0.0
        %1372 = vmatprep.mubr.f32.mxu0 0.0
        %1373 = vmatmul.mubr.f32.gmra.mrb[0].mxu0 %v1306
        %v1374 = vpop.f32.mrb[0].mxu0
        %v1375 = vadd.f32 0.0, %v1374
        %v1376 = vpop.f32.mrb[0].mxu0
        %1377 = vdwg.mxu0
        %1378 = vst.msk [vmem:[#allocation7] sm:$0xff] %vm719, %v1375
        %v1379 = vld [vmem:[#allocation7] sm:$0xff]
        %1381 = vrot.lane.b32.xlu0 %v1379, 127
        %v1382 = vpop.permute.xlu0 %1381
        %1384 = vst.msk [vmem:[#allocation8] sm:$0xff] %vm808, %v1382
        %1385 = vst.msk [vmem:[#allocation8] sm:$0xff] %vm810, 0.0
        %v1386 = vld [vmem:[#allocation8] sm:$0xff]
        %v1387 = vsel %vm816, %v1386, %v1375
        %1388 = vst.msk [vmem:[#allocation7] sm:$0xff] %vm719, %v1387
        %v1389 = vld [vmem:[#allocation7] sm:$0xff]
        %1391 = vrot.lane.b32.xlu0 %v1389, 126
        %v1392 = vpop.permute.xlu0 %1391
        %1394 = vst.msk [vmem:[#allocation8] sm:$0xff] %vm824, %v1392
        %1395 = vst.msk [vmem:[#allocation8] sm:$0xff] %vm826, 0.0
        %v1396 = vld [vmem:[#allocation8] sm:$0xff]
        %v1397 = vsel %vm832, %v1396, %v1387
        %1398 = vst.msk [vmem:[#allocation7] sm:$0xff] %vm719, %v1397
        %v1399 = vld [vmem:[#allocation7] sm:$0xff]
        %1401 = vrot.lane.b32.xlu0 %v1399, 124
        %v1402 = vpop.permute.xlu0 %1401
        %1404 = vst.msk [vmem:[#allocation8] sm:$0xff] %vm840, %v1402
        %1405 = vst.msk [vmem:[#allocation8] sm:$0xff] %vm842, 0.0
        %v1406 = vld [vmem:[#allocation8] sm:$0xff]
        %v1407 = vsel %vm848, %v1406, %v1397
        %1409 = vrot.lane.b32.xlu0 %v1299, 96
        %v1410 = vpop.permute.xlu0 %1409
        %1412 = vrot.lane.b32.xlu0 %v1300, 96
        %v1413 = vpop.permute.xlu0 %1412
        %v1414 = vsel %vm719, %v1410, 0
        %v1416 = vsel %vm719, %v1413, 0
        %1418 = vmatprep.subr.mxu0 0.0
        %1419 = vmatpush1.xpose.msra.mxu0 %v1416
        %1420 = vmatprep.subr.mxu0 0.0
        %1421 = vmatpush1.xpose.msra.mxu0 0.0
        %1422 = vmatprep.subr.mxu0 0.0
        %1423 = vmatpush1.xpose.msra.mxu0 0.0
        %1424 = vmatprep.subr.mxu0 0.0
        %1425 = vmatpush1.xpose.msra.mxu0 0.0
        %1426 = vmatprep.subr.mxu0 0.0
        %1427 = vmatpush1.xpose.msra.mxu0 0.0
        %1428 = vmatprep.subr.mxu0 0.0
        %1429 = vmatpush1.xpose.msra.mxu0 0.0
        %1430 = vmatprep.subr.mxu0 0.0
        %1431 = vmatpush1.xpose.msra.mxu0 0.0
        %1432 = vmatprep.subr.mxu0 0.0
        %1433 = vmatpush1.xpose.msra.mxu0 0.0
        %1434 = vmatprep.subr.mxu0 0.0
        %1435 = vmatpush1.xpose.msra.mxu0 0.0
        %1436 = vmatprep.subr.mxu0 0.0
        %1437 = vmatpush1.xpose.msra.mxu0 0.0
        %1438 = vmatprep.subr.mxu0 0.0
        %1439 = vmatpush1.xpose.msra.mxu0 0.0
        %1440 = vmatprep.subr.mxu0 0.0
        %1441 = vmatpush1.xpose.msra.mxu0 0.0
        %1442 = vmatprep.subr.mxu0 0.0
        %1443 = vmatpush1.xpose.msra.mxu0 0.0
        %1444 = vmatprep.subr.mxu0 0.0
        %1445 = vmatpush1.xpose.msra.mxu0 0.0
        %1446 = vmatprep.subr.mxu0 0.0
        %1447 = vmatpush1.xpose.msra.mxu0 0.0
        %1448 = vmatprep.subr.mxu0 0.0
        %1449 = vmatpush1.xpose.msra.mxu0 0.0
        %1450 = vmatprep.subr.mxu0 0.0
        %1451 = vmatpush1.xpose.msra.mxu0 0.0
        %1452 = vmatprep.subr.mxu0 0.0
        %1453 = vmatpush1.xpose.msra.mxu0 0.0
        %1454 = vmatprep.subr.mxu0 0.0
        %1455 = vmatpush1.xpose.msra.mxu0 0.0
        %1456 = vmatprep.subr.mxu0 0.0
        %1457 = vmatpush1.xpose.msra.mxu0 0.0
        %1458 = vmatprep.subr.mxu0 0.0
        %1459 = vmatpush1.xpose.msra.mxu0 0.0
        %1460 = vmatprep.subr.mxu0 0.0
        %1461 = vmatpush1.xpose.msra.mxu0 0.0
        %1462 = vmatprep.subr.mxu0 0.0
        %1463 = vmatpush1.xpose.msra.mxu0 0.0
        %1464 = vmatprep.subr.mxu0 0.0
        %1465 = vmatpush1.xpose.msra.mxu0 0.0
        %1466 = vmatprep.subr.mxu0 0.0
        %1467 = vmatpush1.xpose.msra.mxu0 0.0
        %1468 = vmatprep.subr.mxu0 0.0
        %1469 = vmatpush1.xpose.msra.mxu0 0.0
        %1470 = vmatprep.subr.mxu0 0.0
        %1471 = vmatpush1.xpose.msra.mxu0 0.0
        %1472 = vmatprep.subr.mxu0 0.0
        %1473 = vmatpush1.xpose.msra.mxu0 0.0
        %1474 = vmatprep.subr.mxu0 0.0
        %1475 = vmatpush1.xpose.msra.mxu0 0.0
        %1476 = vmatprep.subr.mxu0 0.0
        %1477 = vmatpush1.xpose.msra.mxu0 0.0
        %1478 = vmatprep.subr.mxu0 0.0
        %1479 = vmatpush1.xpose.msra.mxu0 0.0
        %1480 = vmatprep.subr.mxu0 0.0
        %1481 = vmatpush1.xpose.msra.mxu0 0.0
        %1482 = vmatprep.mubr.f32.mxu0 0.0
        %1483 = vmatmul.mubr.f32.gmra.mrb[0].mxu0 %v1414
        %v1484 = vpop.f32.mrb[0].mxu0
        %v1485 = vadd.f32 %v1407, %v1484
        %v1486 = vpop.f32.mrb[0].mxu0
        %1487 = vdwg.mxu0
        %v1488 = vmul.f32 %v1485, 0.25
        %v1489 = vsel %vm927, %v1488, -inf
        %1490 = vmax.xlane.f32.xlu0 %v1489
        %v1491 = vpop.xlane.xlu0 %1490
        %v1492 = vsub.f32 %v1488, %v1491
        %v1493 = vmul.f32 %v1492, 1.442695
        %v1494 = vpow.pop %v1493
        %v1495 = vsel %vm927, %v1494, 0.0
        %1496 = vadd.xlane.f32.xlu0 %v1495
        %v1497 = vpop.xlane.xlu0 %1496
        %v1498 = vrcp.pop %v1497
        %v1499 = vmul.f32 %v1494, %v1498
        %v1500 = vmul.f32 %v1499, %v714
        %1502 = vrot.lane.b32.xlu0 %v1301, 96
        %v1503 = vpop.permute.xlu0 %1502
        %v1506 = vsel %vm927, %v1500, 0
        %1508 = vmatprep.subr.mxu0 0.0
        %1509 = vmatpush1.msra.mxu0 %v1503
        %1510 = vmatprep.subr.mxu0 0.0
        %1511 = vmatpush1.msra.mxu0 0.0
        %1512 = vmatprep.subr.mxu0 0.0
        %1513 = vmatpush1.msra.mxu0 0.0
        %1514 = vmatprep.subr.mxu0 0.0
        %1515 = vmatpush1.msra.mxu0 0.0
        %1516 = vmatprep.subr.mxu0 0.0
        %1517 = vmatpush1.msra.mxu0 0.0
        %1518 = vmatprep.subr.mxu0 0.0
        %1519 = vmatpush1.msra.mxu0 0.0
        %1520 = vmatprep.subr.mxu0 0.0
        %1521 = vmatpush1.msra.mxu0 0.0
        %1522 = vmatprep.subr.mxu0 0.0
        %1523 = vmatpush1.msra.mxu0 0.0
        %1524 = vmatprep.subr.mxu0 0.0
        %1525 = vmatpush1.msra.mxu0 0.0
        %1526 = vmatprep.subr.mxu0 0.0
        %1527 = vmatpush1.msra.mxu0 0.0
        %1528 = vmatprep.subr.mxu0 0.0
        %1529 = vmatpush1.msra.mxu0 0.0
        %1530 = vmatprep.subr.mxu0 0.0
        %1531 = vmatpush1.msra.mxu0 0.0
        %1532 = vmatprep.subr.mxu0 0.0
        %1533 = vmatpush1.msra.mxu0 0.0
        %1534 = vmatprep.subr.mxu0 0.0
        %1535 = vmatpush1.msra.mxu0 0.0
        %1536 = vmatprep.subr.mxu0 0.0
        %1537 = vmatpush1.msra.mxu0 0.0
        %1538 = vmatprep.subr.mxu0 0.0
        %1539 = vmatpush1.msra.mxu0 0.0
        %1540 = vmatprep.subr.mxu0 0.0
        %1541 = vmatpush1.msra.mxu0 0.0
        %1542 = vmatprep.subr.mxu0 0.0
        %1543 = vmatpush1.msra.mxu0 0.0
        %1544 = vmatprep.subr.mxu0 0.0
        %1545 = vmatpush1.msra.mxu0 0.0
        %1546 = vmatprep.subr.mxu0 0.0
        %1547 = vmatpush1.msra.mxu0 0.0
        %1548 = vmatprep.subr.mxu0 0.0
        %1549 = vmatpush1.msra.mxu0 0.0
        %1550 = vmatprep.subr.mxu0 0.0
        %1551 = vmatpush1.msra.mxu0 0.0
        %1552 = vmatprep.subr.mxu0 0.0
        %1553 = vmatpush1.msra.mxu0 0.0
        %1554 = vmatprep.subr.mxu0 0.0
        %1555 = vmatpush1.msra.mxu0 0.0
        %1556 = vmatprep.subr.mxu0 0.0
        %1557 = vmatpush1.msra.mxu0 0.0
        %1558 = vmatprep.subr.mxu0 0.0
        %1559 = vmatpush1.msra.mxu0 0.0
        %1560 = vmatprep.subr.mxu0 0.0
        %1561 = vmatpush1.msra.mxu0 0.0
        %1562 = vmatprep.subr.mxu0 0.0
        %1563 = vmatpush1.msra.mxu0 0.0
        %1564 = vmatprep.subr.mxu0 0.0
        %1565 = vmatpush1.msra.mxu0 0.0
        %1566 = vmatprep.subr.mxu0 0.0
        %1567 = vmatpush1.msra.mxu0 0.0
        %1568 = vmatprep.subr.mxu0 0.0
        %1569 = vmatpush1.msra.mxu0 0.0
        %1570 = vmatprep.subr.mxu0 0.0
        %1571 = vmatpush1.msra.mxu0 0.0
        %1572 = vmatprep.mubr.f32.mxu0 0.0
        %1573 = vmatmul.mubr.f32.gmra.mrb[0].mxu0 %v1506
        %v1574 = vpop.f32.mrb[0].mxu0
        %v1575 = vadd.f32 0.0, %v1574
        %v1576 = vpop.f32.mrb[0].mxu0
        %1577 = vdwg.mxu0
        %1579 = vrot.lane.b32.xlu0 %v1575, 32
        %v1580 = vpop.permute.xlu0 %1579
        %vm1582 = vcmask 392448
        %1583 = vst.msk [vmem:[#allocation6] sm:$0xff] %vm1582, %v1580
        %v1584 = vld [vmem:[#allocation2] sm:$0xff]
        %v1585 = vld [vmem:[#allocation3] sm:$0xff]
        %v1586 = vld [vmem:[#allocation4] sm:$0xff]
        %v1587 = vld [vmem:[#allocation5] sm:$0xff]
        %1589 = vrot.lane.b32.xlu0 %v1587, 80
        %v1590 = vpop.permute.xlu0 %1589
        %v1591 = vsel %vm719, %v1590, 0
        %1593 = vmatprep.subr.mxu0 0.0
        %1594 = vmatpush1.xpose.msra.mxu0 %v724
        %1595 = vmatprep.subr.mxu0 0.0
        %1596 = vmatpush1.xpose.msra.mxu0 %v727
        %1597 = vmatprep.subr.mxu0 0.0
        %1598 = vmatpush1.xpose.msra.mxu0 0.0
        %1599 = vmatprep.subr.mxu0 0.0
        %1600 = vmatpush1.xpose.msra.mxu0 0.0
        %1601 = vmatprep.subr.mxu0 0.0
        %1602 = vmatpush1.xpose.msra.mxu0 0.0
        %1603 = vmatprep.subr.mxu0 0.0
        %1604 = vmatpush1.xpose.msra.mxu0 0.0
        %1605 = vmatprep.subr.mxu0 0.0
        %1606 = vmatpush1.xpose.msra.mxu0 0.0
        %1607 = vmatprep.subr.mxu0 0.0
        %1608 = vmatpush1.xpose.msra.mxu0 0.0
        %1609 = vmatprep.subr.mxu0 0.0
        %1610 = vmatpush1.xpose.msra.mxu0 0.0
        %1611 = vmatprep.subr.mxu0 0.0
        %1612 = vmatpush1.xpose.msra.mxu0 0.0
        %1613 = vmatprep.subr.mxu0 0.0
        %1614 = vmatpush1.xpose.msra.mxu0 0.0
        %1615 = vmatprep.subr.mxu0 0.0
        %1616 = vmatpush1.xpose.msra.mxu0 0.0
        %1617 = vmatprep.subr.mxu0 0.0
        %1618 = vmatpush1.xpose.msra.mxu0 0.0
        %1619 = vmatprep.subr.mxu0 0.0
        %1620 = vmatpush1.xpose.msra.mxu0 0.0
        %1621 = vmatprep.subr.mxu0 0.0
        %1622 = vmatpush1.xpose.msra.mxu0 0.0
        %1623 = vmatprep.subr.mxu0 0.0
        %1624 = vmatpush1.xpose.msra.mxu0 0.0
        %1625 = vmatprep.subr.mxu0 0.0
        %1626 = vmatpush1.xpose.msra.mxu0 0.0
        %1627 = vmatprep.subr.mxu0 0.0
        %1628 = vmatpush1.xpose.msra.mxu0 0.0
        %1629 = vmatprep.subr.mxu0 0.0
        %1630 = vmatpush1.xpose.msra.mxu0 0.0
        %1631 = vmatprep.subr.mxu0 0.0
        %1632 = vmatpush1.xpose.msra.mxu0 0.0
        %1633 = vmatprep.subr.mxu0 0.0
        %1634 = vmatpush1.xpose.msra.mxu0 0.0
        %1635 = vmatprep.subr.mxu0 0.0
        %1636 = vmatpush1.xpose.msra.mxu0 0.0
        %1637 = vmatprep.subr.mxu0 0.0
        %1638 = vmatpush1.xpose.msra.mxu0 0.0
        %1639 = vmatprep.subr.mxu0 0.0
        %1640 = vmatpush1.xpose.msra.mxu0 0.0
        %1641 = vmatprep.subr.mxu0 0.0
        %1642 = vmatpush1.xpose.msra.mxu0 0.0
        %1643 = vmatprep.subr.mxu0 0.0
        %1644 = vmatpush1.xpose.msra.mxu0 0.0
        %1645 = vmatprep.subr.mxu0 0.0
        %1646 = vmatpush1.xpose.msra.mxu0 0.0
        %1647 = vmatprep.subr.mxu0 0.0
        %1648 = vmatpush1.xpose.msra.mxu0 0.0
        %1649 = vmatprep.subr.mxu0 0.0
        %1650 = vmatpush1.xpose.msra.mxu0 0.0
        %1651 = vmatprep.subr.mxu0 0.0
        %1652 = vmatpush1.xpose.msra.mxu0 0.0
        %1653 = vmatprep.subr.mxu0 0.0
        %1654 = vmatpush1.xpose.msra.mxu0 0.0
        %1655 = vmatprep.subr.mxu0 0.0
        %1656 = vmatpush1.xpose.msra.mxu0 0.0
        %1657 = vmatprep.mubr.f32.mxu0 0.0
        %1658 = vmatmul.mubr.f32.gmra.mrb[0].mxu0 %v1591
        %v1659 = vpop.f32.mrb[0].mxu0
        %v1660 = vadd.f32 0.0, %v1659
        %v1661 = vpop.f32.mrb[0].mxu0
        %1662 = vdwg.mxu0
        %1663 = vst.msk [vmem:[#allocation7] sm:$0xff] %vm719, %v1660
        %v1664 = vld [vmem:[#allocation7] sm:$0xff]
        %1666 = vrot.lane.b32.xlu0 %v1664, 127
        %v1667 = vpop.permute.xlu0 %1666
        %1669 = vst.msk [vmem:[#allocation8] sm:$0xff] %vm808, %v1667
        %1670 = vst.msk [vmem:[#allocation8] sm:$0xff] %vm810, 0.0
        %v1671 = vld [vmem:[#allocation8] sm:$0xff]
        %v1672 = vsel %vm816, %v1671, %v1660
        %1673 = vst.msk [vmem:[#allocation7] sm:$0xff] %vm719, %v1672
        %v1674 = vld [vmem:[#allocation7] sm:$0xff]
        %1676 = vrot.lane.b32.xlu0 %v1674, 126
        %v1677 = vpop.permute.xlu0 %1676
        %1679 = vst.msk [vmem:[#allocation8] sm:$0xff] %vm824, %v1677
        %1680 = vst.msk [vmem:[#allocation8] sm:$0xff] %vm826, 0.0
        %v1681 = vld [vmem:[#allocation8] sm:$0xff]
        %v1682 = vsel %vm832, %v1681, %v1672
        %1683 = vst.msk [vmem:[#allocation7] sm:$0xff] %vm719, %v1682
        %v1684 = vld [vmem:[#allocation7] sm:$0xff]
        %1686 = vrot.lane.b32.xlu0 %v1684, 124
        %v1687 = vpop.permute.xlu0 %1686
        %1689 = vst.msk [vmem:[#allocation8] sm:$0xff] %vm840, %v1687
        %1690 = vst.msk [vmem:[#allocation8] sm:$0xff] %vm842, 0.0
        %v1691 = vld [vmem:[#allocation8] sm:$0xff]
        %v1692 = vsel %vm848, %v1691, %v1682
        %1694 = vrot.lane.b32.xlu0 %v1584, 80
        %v1695 = vpop.permute.xlu0 %1694
        %1697 = vrot.lane.b32.xlu0 %v1585, 80
        %v1698 = vpop.permute.xlu0 %1697
        %v1699 = vsel %vm719, %v1695, 0
        %v1701 = vsel %vm719, %v1698, 0
        %1703 = vmatprep.subr.mxu0 0.0
        %1704 = vmatpush1.xpose.msra.mxu0 %v1701
        %1705 = vmatprep.subr.mxu0 0.0
        %1706 = vmatpush1.xpose.msra.mxu0 0.0
        %1707 = vmatprep.subr.mxu0 0.0
        %1708 = vmatpush1.xpose.msra.mxu0 0.0
        %1709 = vmatprep.subr.mxu0 0.0
        %1710 = vmatpush1.xpose.msra.mxu0 0.0
        %1711 = vmatprep.subr.mxu0 0.0
        %1712 = vmatpush1.xpose.msra.mxu0 0.0
        %1713 = vmatprep.subr.mxu0 0.0
        %1714 = vmatpush1.xpose.msra.mxu0 0.0
        %1715 = vmatprep.subr.mxu0 0.0
        %1716 = vmatpush1.xpose.msra.mxu0 0.0
        %1717 = vmatprep.subr.mxu0 0.0
        %1718 = vmatpush1.xpose.msra.mxu0 0.0
        %1719 = vmatprep.subr.mxu0 0.0
        %1720 = vmatpush1.xpose.msra.mxu0 0.0
        %1721 = vmatprep.subr.mxu0 0.0
        %1722 = vmatpush1.xpose.msra.mxu0 0.0
        %1723 = vmatprep.subr.mxu0 0.0
        %1724 = vmatpush1.xpose.msra.mxu0 0.0
        %1725 = vmatprep.subr.mxu0 0.0
        %1726 = vmatpush1.xpose.msra.mxu0 0.0
        %1727 = vmatprep.subr.mxu0 0.0
        %1728 = vmatpush1.xpose.msra.mxu0 0.0
        %1729 = vmatprep.subr.mxu0 0.0
        %1730 = vmatpush1.xpose.msra.mxu0 0.0
        %1731 = vmatprep.subr.mxu0 0.0
        %1732 = vmatpush1.xpose.msra.mxu0 0.0
        %1733 = vmatprep.subr.mxu0 0.0
        %1734 = vmatpush1.xpose.msra.mxu0 0.0
        %1735 = vmatprep.subr.mxu0 0.0
        %1736 = vmatpush1.xpose.msra.mxu0 0.0
        %1737 = vmatprep.subr.mxu0 0.0
        %1738 = vmatpush1.xpose.msra.mxu0 0.0
        %1739 = vmatprep.subr.mxu0 0.0
        %1740 = vmatpush1.xpose.msra.mxu0 0.0
        %1741 = vmatprep.subr.mxu0 0.0
        %1742 = vmatpush1.xpose.msra.mxu0 0.0
        %1743 = vmatprep.subr.mxu0 0.0
        %1744 = vmatpush1.xpose.msra.mxu0 0.0
        %1745 = vmatprep.subr.mxu0 0.0
        %1746 = vmatpush1.xpose.msra.mxu0 0.0
        %1747 = vmatprep.subr.mxu0 0.0
        %1748 = vmatpush1.xpose.msra.mxu0 0.0
        %1749 = vmatprep.subr.mxu0 0.0
        %1750 = vmatpush1.xpose.msra.mxu0 0.0
        %1751 = vmatprep.subr.mxu0 0.0
        %1752 = vmatpush1.xpose.msra.mxu0 0.0
        %1753 = vmatprep.subr.mxu0 0.0
        %1754 = vmatpush1.xpose.msra.mxu0 0.0
        %1755 = vmatprep.subr.mxu0 0.0
        %1756 = vmatpush1.xpose.msra.mxu0 0.0
        %1757 = vmatprep.subr.mxu0 0.0
        %1758 = vmatpush1.xpose.msra.mxu0 0.0
        %1759 = vmatprep.subr.mxu0 0.0
        %1760 = vmatpush1.xpose.msra.mxu0 0.0
        %1761 = vmatprep.subr.mxu0 0.0
        %1762 = vmatpush1.xpose.msra.mxu0 0.0
        %1763 = vmatprep.subr.mxu0 0.0
        %1764 = vmatpush1.xpose.msra.mxu0 0.0
        %1765 = vmatprep.subr.mxu0 0.0
        %1766 = vmatpush1.xpose.msra.mxu0 0.0
        %1767 = vmatprep.mubr.f32.mxu0 0.0
        %1768 = vmatmul.mubr.f32.gmra.mrb[0].mxu0 %v1699
        %v1769 = vpop.f32.mrb[0].mxu0
        %v1770 = vadd.f32 %v1692, %v1769
        %v1771 = vpop.f32.mrb[0].mxu0
        %1772 = vdwg.mxu0
        %v1773 = vmul.f32 %v1770, 0.25
        %v1774 = vsel %vm927, %v1773, -inf
        %1775 = vmax.xlane.f32.xlu0 %v1774
        %v1776 = vpop.xlane.xlu0 %1775
        %v1777 = vsub.f32 %v1773, %v1776
        %v1778 = vmul.f32 %v1777, 1.442695
        %v1779 = vpow.pop %v1778
        %v1780 = vsel %vm927, %v1779, 0.0
        %1781 = vadd.xlane.f32.xlu0 %v1780
        %v1782 = vpop.xlane.xlu0 %1781
        %v1783 = vrcp.pop %v1782
        %v1784 = vmul.f32 %v1779, %v1783
        %v1785 = vmul.f32 %v1784, %v714
        %1787 = vrot.lane.b32.xlu0 %v1586, 80
        %v1788 = vpop.permute.xlu0 %1787
        %v1791 = vsel %vm927, %v1785, 0
        %1793 = vmatprep.subr.mxu0 0.0
        %1794 = vmatpush1.msra.mxu0 %v1788
        %1795 = vmatprep.subr.mxu0 0.0
        %1796 = vmatpush1.msra.mxu0 0.0
        %1797 = vmatprep.subr.mxu0 0.0
        %1798 = vmatpush1.msra.mxu0 0.0
        %1799 = vmatprep.subr.mxu0 0.0
        %1800 = vmatpush1.msra.mxu0 0.0
        %1801 = vmatprep.subr.mxu0 0.0
        %1802 = vmatpush1.msra.mxu0 0.0
        %1803 = vmatprep.subr.mxu0 0.0
        %1804 = vmatpush1.msra.mxu0 0.0
        %1805 = vmatprep.subr.mxu0 0.0
        %1806 = vmatpush1.msra.mxu0 0.0
        %1807 = vmatprep.subr.mxu0 0.0
        %1808 = vmatpush1.msra.mxu0 0.0
        %1809 = vmatprep.subr.mxu0 0.0
        %1810 = vmatpush1.msra.mxu0 0.0
        %1811 = vmatprep.subr.mxu0 0.0
        %1812 = vmatpush1.msra.mxu0 0.0
        %1813 = vmatprep.subr.mxu0 0.0
        %1814 = vmatpush1.msra.mxu0 0.0
        %1815 = vmatprep.subr.mxu0 0.0
        %1816 = vmatpush1.msra.mxu0 0.0
        %1817 = vmatprep.subr.mxu0 0.0
        %1818 = vmatpush1.msra.mxu0 0.0
        %1819 = vmatprep.subr.mxu0 0.0
        %1820 = vmatpush1.msra.mxu0 0.0
        %1821 = vmatprep.subr.mxu0 0.0
        %1822 = vmatpush1.msra.mxu0 0.0
        %1823 = vmatprep.subr.mxu0 0.0
        %1824 = vmatpush1.msra.mxu0 0.0
        %1825 = vmatprep.subr.mxu0 0.0
        %1826 = vmatpush1.msra.mxu0 0.0
        %1827 = vmatprep.subr.mxu0 0.0
        %1828 = vmatpush1.msra.mxu0 0.0
        %1829 = vmatprep.subr.mxu0 0.0
        %1830 = vmatpush1.msra.mxu0 0.0
        %1831 = vmatprep.subr.mxu0 0.0
        %1832 = vmatpush1.msra.mxu0 0.0
        %1833 = vmatprep.subr.mxu0 0.0
        %1834 = vmatpush1.msra.mxu0 0.0
        %1835 = vmatprep.subr.mxu0 0.0
        %1836 = vmatpush1.msra.mxu0 0.0
        %1837 = vmatprep.subr.mxu0 0.0
        %1838 = vmatpush1.msra.mxu0 0.0
        %1839 = vmatprep.subr.mxu0 0.0
        %1840 = vmatpush1.msra.mxu0 0.0
        %1841 = vmatprep.subr.mxu0 0.0
        %1842 = vmatpush1.msra.mxu0 0.0
        %1843 = vmatprep.subr.mxu0 0.0
        %1844 = vmatpush1.msra.mxu0 0.0
        %1845 = vmatprep.subr.mxu0 0.0
        %1846 = vmatpush1.msra.mxu0 0.0
        %1847 = vmatprep.subr.mxu0 0.0
        %1848 = vmatpush1.msra.mxu0 0.0
        %1849 = vmatprep.subr.mxu0 0.0
        %1850 = vmatpush1.msra.mxu0 0.0
        %1851 = vmatprep.subr.mxu0 0.0
        %1852 = vmatpush1.msra.mxu0 0.0
        %1853 = vmatprep.subr.mxu0 0.0
        %1854 = vmatpush1.msra.mxu0 0.0
        %1855 = vmatprep.subr.mxu0 0.0
        %1856 = vmatpush1.msra.mxu0 0.0
        %1857 = vmatprep.mubr.f32.mxu0 0.0
        %1858 = vmatmul.mubr.f32.gmra.mrb[0].mxu0 %v1791
        %v1859 = vpop.f32.mrb[0].mxu0
        %v1860 = vadd.f32 0.0, %v1859
        %v1861 = vpop.f32.mrb[0].mxu0
        %1862 = vdwg.mxu0
        %1864 = vrot.lane.b32.xlu0 %v1860, 48
        %v1865 = vpop.permute.xlu0 %1864
        %vm1867 = vcmask 523648
        %1868 = vst.msk [vmem:[#allocation6] sm:$0xff] %vm1867, %v1865
        %v1869 = vld [vmem:[#allocation6] sm:$0xff]
        %v1870 = vld [vmem:[#allocation20] sm:$0xff]
        %v1871 = vld [vmem:[#allocation20 + $0x8] sm:$0xff]
        %v1872 = vld [vmem:[#allocation20 + $0x10] sm:$0xff]
        %v1873 = vld [vmem:[#allocation20 + $0x18] sm:$0xff]
        %v1874 = vld [vmem:[#allocation20 + $0x20] sm:$0xff]
        %v1875 = vld [vmem:[#allocation20 + $0x28] sm:$0xff]
        %v1876 = vld [vmem:[#allocation20 + $0x30] sm:$0xff]
        %v1877 = vld [vmem:[#allocation20 + $0x38] sm:$0xff]
        %v1879 = vsel %vm485, %v1869, 0
        %1881 = vmatprep.subr.mxu0 0.0
        %1882 = vmatpush1.msra.mxu0 %v1870
        %1883 = vmatprep.subr.mxu0 0.0
        %1884 = vmatpush1.msra.mxu0 %v1871
        %1885 = vmatprep.subr.mxu0 0.0
        %1886 = vmatpush1.msra.mxu0 %v1872
        %1887 = vmatprep.subr.mxu0 0.0
        %1888 = vmatpush1.msra.mxu0 %v1873
        %1889 = vmatprep.subr.mxu0 0.0
        %1890 = vmatpush1.msra.mxu0 %v1874
        %1891 = vmatprep.subr.mxu0 0.0
        %1892 = vmatpush1.msra.mxu0 %v1875
        %1893 = vmatprep.subr.mxu0 0.0
        %1894 = vmatpush1.msra.mxu0 %v1876
        %1895 = vmatprep.subr.mxu0 0.0
        %1896 = vmatpush1.msra.mxu0 %v1877
        %1897 = vmatprep.subr.mxu0 0.0
        %1898 = vmatpush1.msra.mxu0 0.0
        %1899 = vmatprep.subr.mxu0 0.0
        %1900 = vmatpush1.msra.mxu0 0.0
        %1901 = vmatprep.subr.mxu0 0.0
        %1902 = vmatpush1.msra.mxu0 0.0
        %1903 = vmatprep.subr.mxu0 0.0
        %1904 = vmatpush1.msra.mxu0 0.0
        %1905 = vmatprep.subr.mxu0 0.0
        %1906 = vmatpush1.msra.mxu0 0.0
        %1907 = vmatprep.subr.mxu0 0.0
        %1908 = vmatpush1.msra.mxu0 0.0
        %1909 = vmatprep.subr.mxu0 0.0
        %1910 = vmatpush1.msra.mxu0 0.0
        %1911 = vmatprep.subr.mxu0 0.0
        %1912 = vmatpush1.msra.mxu0 0.0
        %1913 = vmatprep.subr.mxu0 0.0
        %1914 = vmatpush1.msra.mxu0 0.0
        %1915 = vmatprep.subr.mxu0 0.0
        %1916 = vmatpush1.msra.mxu0 0.0
        %1917 = vmatprep.subr.mxu0 0.0
        %1918 = vmatpush1.msra.mxu0 0.0
        %1919 = vmatprep.subr.mxu0 0.0
        %1920 = vmatpush1.msra.mxu0 0.0
        %1921 = vmatprep.subr.mxu0 0.0
        %1922 = vmatpush1.msra.mxu0 0.0
        %1923 = vmatprep.subr.mxu0 0.0
        %1924 = vmatpush1.msra.mxu0 0.0
        %1925 = vmatprep.subr.mxu0 0.0
        %1926 = vmatpush1.msra.mxu0 0.0
        %1927 = vmatprep.subr.mxu0 0.0
        %1928 = vmatpush1.msra.mxu0 0.0
        %1929 = vmatprep.subr.mxu0 0.0
        %1930 = vmatpush1.msra.mxu0 0.0
        %1931 = vmatprep.subr.mxu0 0.0
        %1932 = vmatpush1.msra.mxu0 0.0
        %1933 = vmatprep.subr.mxu0 0.0
        %1934 = vmatpush1.msra.mxu0 0.0
        %1935 = vmatprep.subr.mxu0 0.0
        %1936 = vmatpush1.msra.mxu0 0.0
        %1937 = vmatprep.subr.mxu0 0.0
        %1938 = vmatpush1.msra.mxu0 0.0
        %1939 = vmatprep.subr.mxu0 0.0
        %1940 = vmatpush1.msra.mxu0 0.0
        %1941 = vmatprep.subr.mxu0 0.0
        %1942 = vmatpush1.msra.mxu0 0.0
        %1943 = vmatprep.subr.mxu0 0.0
        %1944 = vmatpush1.msra.mxu0 0.0
        %1945 = vmatprep.mubr.f32.mxu0 0.0
        %1946 = vmatmul.mubr.f32.gmra.mrb[0].mxu0 %v1879
        %v1947 = vpop.f32.mrb[0].mxu0
        %v1948 = vadd.f32 0.0, %v1947
        %v1949 = vpop.f32.mrb[0].mxu0
        %1950 = vdwg.mxu0
        %1951 = vst [vmem:[%s405] sm:$0xff] %v1948
        %s1952 = sand.u32 %s209, 1
        %s1953 = scalar_lea.sflag [#allocation11], %s1952
        %s1954 = sand.u32 %s209, 1
        %s1955 = smul.addr %s1954, 8
        %s1956 = scalar_lea.vmem [#allocation21], %s1955
        // Predicated region
        $region81: #{tpu_custom_call.1} parent=51 // pred_check
          %p1957 = pneg %p219
        $region82: #{tpu_custom_call.1} parent=51 // pred_check_branch
          %1959 = sbr.rel (%p1957) target = $region84
        $region83: #{tpu_custom_call.1} parent=51 // pred_region
          %s1961 = ssub.s32 128, 128
          %1962 = vsyncadd %s1953, %s1961
          %s1963 = smul.addr %s28, 128
          %s1964 = scalar_lea.hbm %s8, %s1963
          %s1966 = sshll.u32 %s1956, 4
          %s1967 = int_to_ptr.vmem [resolvable:$true] %s1966
          %1969 = dma.vmem_to_hbm [thread:$0]  %s1967, 128, %s1964, %s1953
        $region84: #{tpu_custom_call.1} parent=51 // pred_fallthru
          _
      $region52: #{tpu_custom_call.1} parent=5 // pred_fallthru
        _
      %p1970 = scmp.le.s32.totalorder 2, %s23
      // Predicated region
      $region85: #{tpu_custom_call.1} parent=5 // pred_check
        %p1971 = pneg %p1970
      $region86: #{tpu_custom_call.1} parent=5 // pred_check_branch
        %1973 = sbr.rel (%p1971) target = $region88
      $region87: #{tpu_custom_call.1} parent=5 // pred_region
        %s1974 = ssub.s32 %s23, 2
        // Predicated region
        $region89: #{tpu_custom_call.1} parent=87 // pred_check
          %p1975 = pneg %p225
        $region90: #{tpu_custom_call.1} parent=87 // pred_check_branch
          %1977 = sbr.rel (%p1975) target = $region92
        $region91: #{tpu_custom_call.1} parent=87 // pred_region
          %s1978 = sand.u32 %s210, 1
          %s1979 = scalar_lea.sflag [#allocation11], %s1978
          %s1980 = sand.u32 %s210, 1
          %s1981 = smul.addr %s1980, 8
          %s1982 = scalar_lea.vmem [#allocation21], %s1981
          %1983 = dma.done %s1979, 128
        $region92: #{tpu_custom_call.1} parent=87 // pred_fallthru
          _
      $region88: #{tpu_custom_call.1} parent=5 // pred_fallthru
        _
    $region6: #{tpu_custom_call.1} parent=1 // loop_footer
      %s27 = sadd.s32 1, %s23
    $region7: #{tpu_custom_call.1} parent=1 // loop_footer_branch
      %22 = sbr.rel target = $region3
    $region8: #{tpu_custom_call.1} parent=1 // loop_exit
      _
    %1984 = vsyncpa [#allocation10], 1
    %s1985 = scalar_lea.sflag [#allocation10], 1
    %1986 = vsyncpa %s1985, 1
    %1987 = vsyncpa [#allocation13], 1
    %1988 = vsyncpa [#allocation16], 1
    %1989 = vsyncpa [#allocation19], 1
    %1990 = vsyncpa [#allocation11], 1
    %s1991 = scalar_lea.sflag [#allocation11], 1
    %1992 = vsyncpa %s1991, 1

</llo_original>
